<compile_context>
chip_gen: v5e
topology: v5e:2x2
jax: 0.10.0
libtpu: 0.0.40
codegen_flags: <defaults>
</compile_context>

<pallas_src>
import functools

import jax
import jax.numpy as jnp
from jax.experimental import pallas as pl
from jax.experimental.pallas import tpu as pltpu


def _bf16(x):
    return x.astype(jnp.bfloat16)


# ----------------------------------------------------------------------------- kernels

def _linear_kernel(x_ref, w_ref, b_ref, o_ref, *, relu):
    # x: (bm, din) f32, w: (din, dout) bf16, b: (1, dout) f32 -- f32 MXU accumulate.
    y = jnp.dot(_bf16(x_ref[...]), w_ref[...],
                preferred_element_type=jnp.float32) + b_ref[...]
    if relu:
        y = jnp.maximum(y, 0.0)
    o_ref[...] = y.astype(o_ref.dtype)


def _ln_linear_kernel(x_ref, g_ref, beta_ref, w_ref, b_ref, ln_ref, o_ref, *, eps):
    # LayerNorm(x) (PyTorch semantics: biased variance, eps=1e-5) fused with final Linear.
    x = x_ref[...]
    mu = jnp.mean(x, axis=-1, keepdims=True)
    var = jnp.mean((x - mu) * (x - mu), axis=-1, keepdims=True)
    xn = (x - mu) * jax.lax.rsqrt(var + eps) * g_ref[...] + beta_ref[...]
    ln_ref[...] = xn.astype(ln_ref.dtype)
    o_ref[...] = (jnp.dot(_bf16(xn), w_ref[...],
                          preferred_element_type=jnp.float32) + b_ref[...]).astype(o_ref.dtype)


def _encoder_layer_kernel(x_ref, inw_ref, inb_ref, outw_ref, outb_ref,
                          ff1w_ref, ff1b_ref, ff2w_ref, ff2b_ref,
                          g_ref, beta_ref, o_ref, *, nhead, eps, scale):
    """One full TransEncoderLayer for one batch element. x block: (1, S, d_model) f32."""
    x = x_ref[0]                                            # (S, d_model) f32
    S, d_model = x.shape
    hd = d_model // nhead

    # ---- self attention -------------------------------------------------------
    # Single lane-dense QKV projection for all heads: (S, 3*d_model).
    qkv = jnp.dot(_bf16(x), inw_ref[...],
                  preferred_element_type=jnp.float32) + inb_ref[...]
    q = qkv[:, :d_model] * scale                            # fold 1/sqrt(hd) into q
    k = qkv[:, d_model:2 * d_model]
    v = qkv[:, 2 * d_model:]

    outw = outw_ref[...]                                    # (d_model, d_model) bf16
    # Heads folded straight into the output projection (no concat / reshape):
    #   concat_h(o_h) @ W_out == sum_h o_h @ W_out[h*hd:(h+1)*hd, :]
    attn_out = jnp.zeros((S, d_model), jnp.float32) + outb_ref[...]
    for h in range(nhead):                                  # static unroll, VMEM-resident
        sl = slice(h * hd, (h + 1) * hd)
        qh, kh, vh = q[:, sl], k[:, sl], v[:, sl]
        # q @ k^T without an explicit transpose (contract last dims)
        s = jax.lax.dot_general(_bf16(qh), _bf16(kh), (((1,), (1,)), ((), ())),
                                preferred_element_type=jnp.float32)      # (S, S)
        m = jnp.max(s, axis=-1, keepdims=True)
        e = jnp.exp(s - m)                                  # EUP
        p = e * pl.reciprocal(jnp.sum(e, axis=-1, keepdims=True), approx=True)
        oh = jnp.dot(_bf16(p), _bf16(vh), preferred_element_type=jnp.float32)  # (S, hd)
        attn_out = attn_out + jnp.dot(_bf16(oh), outw[sl, :],
                                      preferred_element_type=jnp.float32)

    g = g_ref[...]
    beta = beta_ref[...]

    def add_ln(a, b):                                       # LayerNorm(a + b), shared norm
        z = a + b
        mu = jnp.mean(z, axis=-1, keepdims=True)
        var = jnp.mean((z - mu) * (z - mu), axis=-1, keepdims=True)
        return (z - mu) * jax.lax.rsqrt(var + eps) * g + beta

    # residual + norm (dropout1 = identity in eval mode)
    x1 = add_ln(x, attn_out)

    # ---- feed forward ---------------------------------------------------------
    hdn = jnp.dot(_bf16(x1), ff1w_ref[...],
                  preferred_element_type=jnp.float32) + ff1b_ref[...]
    hdn = jnp.maximum(hdn, 0.0)                             # ReLU (inner dropout = identity)
    ff = jnp.dot(_bf16(hdn), ff2w_ref[...],
                 preferred_element_type=jnp.float32) + ff2b_ref[...]

    # residual + (same) norm (dropout2 = identity)
    o_ref[0] = add_ln(x1, ff).astype(o_ref.dtype)


# ----------------------------------------------------------------------------- wrappers

def pallas_linear(x, w, b, relu=False, block_m=256):
    m, kdim = x.shape
    n = w.shape[1]
    bm = m if m <= block_m else block_m
    return pl.pallas_call(
        functools.partial(_linear_kernel, relu=relu),
        grid=(pl.cdiv(m, bm),),
        in_specs=[pl.BlockSpec((bm, kdim), lambda i: (i, 0)),
                  pl.BlockSpec((kdim, n), lambda i: (0, 0)),
                  pl.BlockSpec((1, n), lambda i: (0, 0))],
        out_specs=pl.BlockSpec((bm, n), lambda i: (i, 0)),
        out_shape=jax.ShapeDtypeStruct((m, n), jnp.float32),
        compiler_params=pltpu.CompilerParams(dimension_semantics=("parallel",)),
    )(x, _bf16(w), b.reshape(1, n))


def pallas_layernorm_linear(x, gamma, beta, w, b, eps=1e-5, block_m=256):
    """Returns (layernorm(x), layernorm(x) @ w + b) from one fused kernel."""
    m, d = x.shape
    n = w.shape[1]
    bm = m if m <= block_m else block_m
    return pl.pallas_call(
        functools.partial(_ln_linear_kernel, eps=eps),
        grid=(pl.cdiv(m, bm),),
        in_specs=[pl.BlockSpec((bm, d), lambda i: (i, 0)),
                  pl.BlockSpec((1, d), lambda i: (0, 0)),
                  pl.BlockSpec((1, d), lambda i: (0, 0)),
                  pl.BlockSpec((d, n), lambda i: (0, 0)),
                  pl.BlockSpec((1, n), lambda i: (0, 0))],
        out_specs=[pl.BlockSpec((bm, d), lambda i: (i, 0)),
                   pl.BlockSpec((bm, n), lambda i: (i, 0))],
        out_shape=(jax.ShapeDtypeStruct((m, d), jnp.float32),
                   jax.ShapeDtypeStruct((m, n), jnp.float32)),
        compiler_params=pltpu.CompilerParams(dimension_semantics=("parallel",)),
    )(x, gamma.reshape(1, d), beta.reshape(1, d), _bf16(w), b.reshape(1, n))


def pallas_encoder_layer(x, p, nhead, eps=1e-5):
    """Fused TransEncoderLayer. x: (B, S, d_model) f32 -> (B, S, d_model) f32."""
    B, S, d_model = x.shape
    assert d_model % nhead == 0
    hd = d_model // nhead
    dff = p["ff1_w"].shape[1]
    scale = float(hd) ** -0.5

    def wspec(shape):
        nd = len(shape)
        return pl.BlockSpec(shape, lambda b: (0,) * nd)

    kern = functools.partial(_encoder_layer_kernel, nhead=nhead, eps=eps, scale=scale)
    return pl.pallas_call(
        kern,
        grid=(B,),
        in_specs=[
            pl.BlockSpec((1, S, d_model), lambda b: (b, 0, 0)),
            wspec((d_model, 3 * d_model)), wspec((1, 3 * d_model)),
            wspec((d_model, d_model)),     wspec((1, d_model)),
            wspec((d_model, dff)),         wspec((1, dff)),
            wspec((dff, d_model)),         wspec((1, d_model)),
            wspec((1, d_model)),           wspec((1, d_model)),
        ],
        out_specs=pl.BlockSpec((1, S, d_model), lambda b: (b, 0, 0)),
        out_shape=jax.ShapeDtypeStruct((B, S, d_model), jnp.float32),
        compiler_params=pltpu.CompilerParams(dimension_semantics=("parallel",)),
    )(x,
      _bf16(p["in_w"]),  p["in_b"].reshape(1, -1),
      _bf16(p["out_w"]), p["out_b"].reshape(1, -1),
      _bf16(p["ff1_w"]), p["ff1_b"].reshape(1, -1),
      _bf16(p["ff2_w"]), p["ff2_b"].reshape(1, -1),
      p["norm_g"].reshape(1, -1), p["norm_b"].reshape(1, -1))


# ----------------------------------------------------------------------------- model

def trans_encoder_forward(src, params, nhead):
    """src: (S, B, d_dual[0]) -> (out: (S, B, d_dual[1]), res: list of intermediates)."""
    S, B, d_in = src.shape
    d_model = params["lin1_w"].shape[1]

    res = []
    # batch-major (B, S, d) layout so the layer kernel sees lane-dense per-batch blocks
    xb = src.transpose(1, 0, 2).reshape(B * S, d_in)
    xb = pallas_linear(xb, params["lin1_w"], params["lin1_b"], relu=True)  # dropout = identity
    x = xb.reshape(B, S, d_model)
    res.append(x.transpose(1, 0, 2))

    for layer_p in params["layers"]:
        x = pallas_encoder_layer(x, layer_p, nhead)
        res.append(x.transpose(1, 0, 2))

    ln_out, out = pallas_layernorm_linear(
        x.reshape(B * S, d_model),
        params["norm_g"], params["norm_b"],
        params["lin2_w"], params["lin2_b"])
    res.append(ln_out.reshape(B, S, d_model).transpose(1, 0, 2))

    d_out = params["lin2_w"].shape[1]
    return out.reshape(B, S, d_out).transpose(1, 0, 2), res


# ----------------------------------------------------------------------------- params

def _dense(key, din, dout):
    kw, kb = jax.random.split(key)
    w = jax.random.normal(kw, (din, dout), jnp.float32) * (1.0 / jnp.sqrt(din))
    b = jax.random.normal(kb, (dout,), jnp.float32) * 0.01
    return w, b


def init_params(key, d_dual, d_model, nhead, num_layers, dim_feedforward):
    k1, k2, k3, k4, k5, k6 = jax.random.split(key, 6)

    lin1_w, lin1_b = _dense(k1, d_dual[0], d_model)
    lin2_w, lin2_b = _dense(k2, d_model, d_dual[1])

    # One encoder layer's params; _get_clones deepcopies, so every layer starts identical
    # (sharing the same arrays is value-equivalent for this forward pass).
    in_w, in_b = _dense(k3, d_model, 3 * d_model)
    out_w, out_b = _dense(k4, d_model, d_model)
    ff1_w, ff1_b = _dense(k5, d_model, dim_feedforward)
    ff2_w, ff2_b = _dense(k6, dim_feedforward, d_model)
    layer = {
        "in_w": in_w, "in_b": in_b,
        "out_w": out_w, "out_b": out_b,
        "ff1_w": ff1_w, "ff1_b": ff1_b,
        "ff2_w": ff2_w, "ff2_b": ff2_b,
        "norm_g": jnp.ones((d_model,), jnp.float32),
        "norm_b": jnp.zeros((d_model,), jnp.float32),
    }

    return {
        "lin1_w": lin1_w, "lin1_b": lin1_b,
        "lin2_w": lin2_w, "lin2_b": lin2_b,
        "layers": [layer for _ in range(num_layers)],
        "norm_g": jnp.ones((d_model,), jnp.float32),
        "norm_b": jnp.zeros((d_model,), jnp.float32),
    }


# ----------------------------------------------------------------------------- main

if __name__ == "__main__":
    # small, module-consistent shapes
    S, B = 8, 2                       # sequence length, batch
    d_dual = (16, 16)                 # (input feature dim, output feature dim)
    d_model = 32
    nhead = 4
    num_layers = 2
    dim_feedforward = 64

    key = jax.random.PRNGKey(0)
    k_src, k_par = jax.random.split(key)
    src = jax.random.normal(k_src, (S, B, d_dual[0]), jnp.float32)
    params = init_params(k_par, d_dual, d_model, nhead, num_layers, dim_feedforward)

    fwd = jax.jit(functools.partial(trans_encoder_forward, nhead=nhead))
    out, res = fwd(src, params)
    out = jax.block_until_ready(out)
    for r in res:
        jax.block_until_ready(r)

    assert out.shape == (S, B, d_dual[1])
    assert len(res) == num_layers + 2          # initial proj + each layer + final norm
    assert all(r.shape == (S, B, d_model) for r in res)
    assert bool(jnp.all(jnp.isfinite(out)))

    print("KERNEL_OK")
</pallas_src>

<mosaic_0001>
module attributes {stable_mosaic.version = 11 : i64} {
  func.func @_linear_kernel(%arg0: i32, %arg1: memref<16x16xf32, #tpu.memory_space<vmem>>, %arg2: memref<16x32xbf16, #tpu.memory_space<vmem>>, %arg3: memref<1x32xf32, #tpu.memory_space<vmem>>, %arg4: memref<16x32xf32, #tpu.memory_space<vmem>>) attributes {dimension_semantics = [#tpu.dimension_semantics<parallel>], iteration_bounds = array<i64: 1>, scalar_prefetch = 0 : i64, scratch_operands = 0 : i64, tpu.core_type = #tpu.core_type<tc>, window_params = [{transform_indices = @transform_0, window_bounds = array<i64: 16, 16>}, {pipeline_mode = #tpu.pipeline_mode<synchronous>, transform_indices = @transform_1, window_bounds = array<i64: 16, 32>}, {pipeline_mode = #tpu.pipeline_mode<synchronous>, transform_indices = @transform_2, window_bounds = array<i64: 1, 32>}, {transform_indices = @transform_3, window_bounds = array<i64: 16, 32>}]} {
    %c0 = arith.constant 0 : index
    %c0_0 = arith.constant 0 : index
    %0 = vector.load %arg1[%c0, %c0_0] : memref<16x16xf32, #tpu.memory_space<vmem>>, vector<16x16xf32>
    %1 = arith.truncf %0 : vector<16x16xf32> to vector<16x16xbf16>
    %c0_1 = arith.constant 0 : index
    %c0_2 = arith.constant 0 : index
    %2 = vector.load %arg2[%c0_1, %c0_2] : memref<16x32xbf16, #tpu.memory_space<vmem>>, vector<16x32xbf16>
    %cst = arith.constant dense<0.000000e+00> : vector<16x32xf32>
    %3 = tpu.matmul %1, %2, %cst {dimension_numbers = #tpu.dot_dimension_numbers<[1], [0], [0], [1], [0, 0, 1, 1], [], []>} : vector<16x16xbf16>, vector<16x32xbf16>, vector<16x32xf32> -> vector<16x32xf32>
    %c0_3 = arith.constant 0 : index
    %c0_4 = arith.constant 0 : index
    %4 = vector.load %arg3[%c0_3, %c0_4] : memref<1x32xf32, #tpu.memory_space<vmem>>, vector<1x32xf32>
    %5 = vector.broadcast %4 : vector<1x32xf32> to vector<16x32xf32>
    %6 = arith.addf %3, %5 : vector<16x32xf32>
    %cst_5 = arith.constant 0.000000e+00 : f32
    %7 = vector.broadcast %cst_5 : f32 to vector<16x32xf32>
    %8 = arith.maximumf %6, %7 : vector<16x32xf32>
    %c0_6 = arith.constant 0 : index
    %c0_7 = arith.constant 0 : index
    %9 = vector.load %arg4[%c0_6, %c0_7] : memref<16x32xf32, #tpu.memory_space<vmem>>, vector<16x32xf32>
    tpu.vector_store %arg4[%c0_6, %c0_7], %8 {strides = array<i32>} : memref<16x32xf32, #tpu.memory_space<vmem>>, vector<16x32xf32>,
    return
  }
  func.func @transform_0(%arg0: i32) -> (i32, i32) {
    %c0_i32 = arith.constant 0 : i32
    %c0_i32_0 = arith.constant 0 : i32
    return %arg0, %c0_i32 : i32, i32
  }
  func.func @transform_1(%arg0: i32) -> (i32, i32) {
    %c0_i32 = arith.constant 0 : i32
    %c0_i32_0 = arith.constant 0 : i32
    %c0_i32_1 = arith.constant 0 : i32
    return %c0_i32, %c0_i32_0 : i32, i32
  }
  func.func @transform_2(%arg0: i32) -> (i32, i32) {
    %c0_i32 = arith.constant 0 : i32
    %c0_i32_0 = arith.constant 0 : i32
    %c0_i32_1 = arith.constant 0 : i32
    return %c0_i32, %c0_i32_0 : i32, i32
  }
  func.func @transform_3(%arg0: i32) -> (i32, i32) {
    %c0_i32 = arith.constant 0 : i32
    %c0_i32_0 = arith.constant 0 : i32
    return %arg0, %c0_i32 : i32, i32
  }
}

module attributes {stable_mosaic.version = 11 : i64} {
  func.func @_ln_linear_kernel(%arg0: i32, %arg1: memref<16x32xf32, #tpu.memory_space<vmem>>, %arg2: memref<1x32xf32, #tpu.memory_space<vmem>>, %arg3: memref<1x32xf32, #tpu.memory_space<vmem>>, %arg4: memref<32x16xbf16, #tpu.memory_space<vmem>>, %arg5: memref<1x16xf32, #tpu.memory_space<vmem>>, %arg6: memref<16x32xf32, #tpu.memory_space<vmem>>, %arg7: memref<16x16xf32, #tpu.memory_space<vmem>>) attributes {dimension_semantics = [#tpu.dimension_semantics<parallel>], iteration_bounds = array<i64: 1>, scalar_prefetch = 0 : i64, scratch_operands = 0 : i64, tpu.core_type = #tpu.core_type<tc>, window_params = [{transform_indices = @transform_0, window_bounds = array<i64: 16, 32>}, {pipeline_mode = #tpu.pipeline_mode<synchronous>, transform_indices = @transform_1, window_bounds = array<i64: 1, 32>}, {pipeline_mode = #tpu.pipeline_mode<synchronous>, transform_indices = @transform_2, window_bounds = array<i64: 1, 32>}, {pipeline_mode = #tpu.pipeline_mode<synchronous>, transform_indices = @transform_3, window_bounds = array<i64: 32, 16>}, {pipeline_mode = #tpu.pipeline_mode<synchronous>, transform_indices = @transform_4, window_bounds = array<i64: 1, 16>}, {transform_indices = @transform_5, window_bounds = array<i64: 16, 32>}, {transform_indices = @transform_6, window_bounds = array<i64: 16, 16>}]} {
    %c0 = arith.constant 0 : index
    %c0_0 = arith.constant 0 : index
    %0 = vector.load %arg1[%c0, %c0_0] : memref<16x32xf32, #tpu.memory_space<vmem>>, vector<16x32xf32>
    %cst = arith.constant dense<0.000000e+00> : vector<16xf32>
    %1 = vector.multi_reduction <add>, %0, %cst [1] : vector<16x32xf32> to vector<16xf32>
    %2 = vector.shape_cast %1 : vector<16xf32> to vector<16x1xf32>
    %cst_1 = arith.constant 3.200000e+01 : f32
    %3 = vector.broadcast %cst_1 : f32 to vector<16x1xf32>
    %4 = arith.divf %2, %3 : vector<16x1xf32>
    %5 = vector.broadcast %4 : vector<16x1xf32> to vector<16x32xf32>
    %6 = arith.subf %0, %5 : vector<16x32xf32>
    %7 = vector.broadcast %4 : vector<16x1xf32> to vector<16x32xf32>
    %8 = arith.subf %0, %7 : vector<16x32xf32>
    %9 = arith.mulf %6, %8 : vector<16x32xf32>
    %cst_2 = arith.constant dense<0.000000e+00> : vector<16xf32>
    %10 = vector.multi_reduction <add>, %9, %cst_2 [1] : vector<16x32xf32> to vector<16xf32>
    %11 = vector.shape_cast %10 : vector<16xf32> to vector<16x1xf32>
    %cst_3 = arith.constant 3.200000e+01 : f32
    %12 = vector.broadcast %cst_3 : f32 to vector<16x1xf32>
    %13 = arith.divf %11, %12 : vector<16x1xf32>
    %14 = vector.broadcast %4 : vector<16x1xf32> to vector<16x32xf32>
    %15 = arith.subf %0, %14 : vector<16x32xf32>
    %cst_4 = arith.constant 9.99999974E-6 : f32
    %16 = vector.broadcast %cst_4 : f32 to vector<16x1xf32>
    %17 = arith.addf %13, %16 : vector<16x1xf32>
    %18 = math.rsqrt %17 : vector<16x1xf32>
    %19 = vector.broadcast %18 : vector<16x1xf32> to vector<16x32xf32>
    %20 = arith.mulf %15, %19 : vector<16x32xf32>
    %c0_5 = arith.constant 0 : index
    %c0_6 = arith.constant 0 : index
    %21 = vector.load %arg2[%c0_5, %c0_6] : memref<1x32xf32, #tpu.memory_space<vmem>>, vector<1x32xf32>
    %22 = vector.broadcast %21 : vector<1x32xf32> to vector<16x32xf32>
    %23 = arith.mulf %20, %22 : vector<16x32xf32>
    %c0_7 = arith.constant 0 : index
    %c0_8 = arith.constant 0 : index
    %24 = vector.load %arg3[%c0_7, %c0_8] : memref<1x32xf32, #tpu.memory_space<vmem>>, vector<1x32xf32>
    %25 = vector.broadcast %24 : vector<1x32xf32> to vector<16x32xf32>
    %26 = arith.addf %23, %25 : vector<16x32xf32>
    %c0_9 = arith.constant 0 : index
    %c0_10 = arith.constant 0 : index
    %27 = vector.load %arg6[%c0_9, %c0_10] : memref<16x32xf32, #tpu.memory_space<vmem>>, vector<16x32xf32>
    tpu.vector_store %arg6[%c0_9, %c0_10], %26 {strides = array<i32>} : memref<16x32xf32, #tpu.memory_space<vmem>>, vector<16x32xf32>,
    %28 = arith.truncf %26 : vector<16x32xf32> to vector<16x32xbf16>
    %c0_11 = arith.constant 0 : index
    %c0_12 = arith.constant 0 : index
    %29 = vector.load %arg4[%c0_11, %c0_12] : memref<32x16xbf16, #tpu.memory_space<vmem>>, vector<32x16xbf16>
    %cst_13 = arith.constant dense<0.000000e+00> : vector<16x16xf32>
    %30 = tpu.matmul %28, %29, %cst_13 {dimension_numbers = #tpu.dot_dimension_numbers<[1], [0], [0], [1], [0, 0, 1, 1], [], []>} : vector<16x32xbf16>, vector<32x16xbf16>, vector<16x16xf32> -> vector<16x16xf32>
    %c0_14 = arith.constant 0 : index
    %c0_15 = arith.constant 0 : index
    %31 = vector.load %arg5[%c0_14, %c0_15] : memref<1x16xf32, #tpu.memory_space<vmem>>, vector<1x16xf32>
    %32 = vector.broadcast %31 : vector<1x16xf32> to vector<16x16xf32>
    %33 = arith.addf %30, %32 : vector<16x16xf32>
    %c0_16 = arith.constant 0 : index
    %c0_17 = arith.constant 0 : index
    %34 = vector.load %arg7[%c0_16, %c0_17] : memref<16x16xf32, #tpu.memory_space<vmem>>, vector<16x16xf32>
    tpu.vector_store %arg7[%c0_16, %c0_17], %33 {strides = array<i32>} : memref<16x16xf32, #tpu.memory_space<vmem>>, vector<16x16xf32>,
    return
  }
  func.func @transform_0(%arg0: i32) -> (i32, i32) {
    %c0_i32 = arith.constant 0 : i32
    %c0_i32_0 = arith.constant 0 : i32
    return %arg0, %c0_i32 : i32, i32
  }
  func.func @transform_1(%arg0: i32) -> (i32, i32) {
    %c0_i32 = arith.constant 0 : i32
    %c0_i32_0 = arith.constant 0 : i32
    %c0_i32_1 = arith.constant 0 : i32
    return %c0_i32, %c0_i32_0 : i32, i32
  }
  func.func @transform_2(%arg0: i32) -> (i32, i32) {
    %c0_i32 = arith.constant 0 : i32
    %c0_i32_0 = arith.constant 0 : i32
    %c0_i32_1 = arith.constant 0 : i32
    return %c0_i32, %c0_i32_0 : i32, i32
  }
  func.func @transform_3(%arg0: i32) -> (i32, i32) {
    %c0_i32 = arith.constant 0 : i32
    %c0_i32_0 = arith.constant 0 : i32
    %c0_i32_1 = arith.constant 0 : i32
    return %c0_i32, %c0_i32_0 : i32, i32
  }
  func.func @transform_4(%arg0: i32) -> (i32, i32) {
    %c0_i32 = arith.constant 0 : i32
    %c0_i32_0 = arith.constant 0 : i32
    %c0_i32_1 = arith.constant 0 : i32
    return %c0_i32, %c0_i32_0 : i32, i32
  }
  func.func @transform_5(%arg0: i32) -> (i32, i32) {
    %c0_i32 = arith.constant 0 : i32
    %c0_i32_0 = arith.constant 0 : i32
    return %arg0, %c0_i32 : i32, i32
  }
  func.func @transform_6(%arg0: i32) -> (i32, i32) {
    %c0_i32 = arith.constant 0 : i32
    %c0_i32_0 = arith.constant 0 : i32
    return %arg0, %c0_i32 : i32, i32
  }
}

module attributes {stable_mosaic.version = 11 : i64} {
  func.func @_encoder_layer_kernel(%arg0: i32, %arg1: memref<1x8x32xf32, #tpu.memory_space<vmem>>, %arg2: memref<32x96xbf16, #tpu.memory_space<vmem>>, %arg3: memref<1x96xf32, #tpu.memory_space<vmem>>, %arg4: memref<32x32xbf16, #tpu.memory_space<vmem>>, %arg5: memref<1x32xf32, #tpu.memory_space<vmem>>, %arg6: memref<32x64xbf16, #tpu.memory_space<vmem>>, %arg7: memref<1x64xf32, #tpu.memory_space<vmem>>, %arg8: memref<64x32xbf16, #tpu.memory_space<vmem>>, %arg9: memref<1x32xf32, #tpu.memory_space<vmem>>, %arg10: memref<1x32xf32, #tpu.memory_space<vmem>>, %arg11: memref<1x32xf32, #tpu.memory_space<vmem>>, %arg12: memref<1x8x32xf32, #tpu.memory_space<vmem>>) attributes {dimension_semantics = [#tpu.dimension_semantics<parallel>], iteration_bounds = array<i64: 2>, scalar_prefetch = 0 : i64, scratch_operands = 0 : i64, tpu.core_type = #tpu.core_type<tc>, window_params = [{transform_indices = @transform_0, window_bounds = array<i64: 1, 8, 32>}, {pipeline_mode = #tpu.pipeline_mode<synchronous>, transform_indices = @transform_1, window_bounds = array<i64: 32, 96>}, {pipeline_mode = #tpu.pipeline_mode<synchronous>, transform_indices = @transform_2, window_bounds = array<i64: 1, 96>}, {pipeline_mode = #tpu.pipeline_mode<synchronous>, transform_indices = @transform_3, window_bounds = array<i64: 32, 32>}, {pipeline_mode = #tpu.pipeline_mode<synchronous>, transform_indices = @transform_4, window_bounds = array<i64: 1, 32>}, {pipeline_mode = #tpu.pipeline_mode<synchronous>, transform_indices = @transform_5, window_bounds = array<i64: 32, 64>}, {pipeline_mode = #tpu.pipeline_mode<synchronous>, transform_indices = @transform_6, window_bounds = array<i64: 1, 64>}, {pipeline_mode = #tpu.pipeline_mode<synchronous>, transform_indices = @transform_7, window_bounds = array<i64: 64, 32>}, {pipeline_mode = #tpu.pipeline_mode<synchronous>, transform_indices = @transform_8, window_bounds = array<i64: 1, 32>}, {pipeline_mode = #tpu.pipeline_mode<synchronous>, transform_indices = @transform_9, window_bounds = array<i64: 1, 32>}, {pipeline_mode = #tpu.pipeline_mode<synchronous>, transform_indices = @transform_10, window_bounds = array<i64: 1, 32>}, {transform_indices = @transform_11, window_bounds = array<i64: 1, 8, 32>}]} {
    %c0 = arith.constant 0 : index
    %c0_0 = arith.constant 0 : index
    %c0_1 = arith.constant 0 : index
    %0 = vector.load %arg1[%c0, %c0_0, %c0_1] : memref<1x8x32xf32, #tpu.memory_space<vmem>>, vector<1x8x32xf32>
    %1 = vector.shape_cast %0 : vector<1x8x32xf32> to vector<8x32xf32>
    %2 = arith.truncf %1 : vector<8x32xf32> to vector<8x32xbf16>
    %c0_2 = arith.constant 0 : index
    %c0_3 = arith.constant 0 : index
    %3 = vector.load %arg2[%c0_2, %c0_3] : memref<32x96xbf16, #tpu.memory_space<vmem>>, vector<32x96xbf16>
    %cst = arith.constant dense<0.000000e+00> : vector<8x96xf32>
    %4 = tpu.matmul %2, %3, %cst {dimension_numbers = #tpu.dot_dimension_numbers<[1], [0], [0], [1], [0, 0, 1, 1], [], []>} : vector<8x32xbf16>, vector<32x96xbf16>, vector<8x96xf32> -> vector<8x96xf32>
    %c0_4 = arith.constant 0 : index
    %c0_5 = arith.constant 0 : index
    %5 = vector.load %arg3[%c0_4, %c0_5] : memref<1x96xf32, #tpu.memory_space<vmem>>, vector<1x96xf32>
    %6 = vector.broadcast %5 : vector<1x96xf32> to vector<8x96xf32>
    %7 = arith.addf %4, %6 : vector<8x96xf32>
    %8 = vector.extract_strided_slice %7 {offsets = [0, 0], sizes = [8, 32], strides = [1, 1]} : vector<8x96xf32> to vector<8x32xf32>
    %cst_6 = arith.constant 0.353553385 : f32
    %9 = vector.broadcast %cst_6 : f32 to vector<8x32xf32>
    %10 = arith.mulf %8, %9 : vector<8x32xf32>
    %11 = vector.extract_strided_slice %7 {offsets = [0, 32], sizes = [8, 32], strides = [1, 1]} : vector<8x96xf32> to vector<8x32xf32>
    %12 = vector.extract_strided_slice %7 {offsets = [0, 64], sizes = [8, 32], strides = [1, 1]} : vector<8x96xf32> to vector<8x32xf32>
    %c0_7 = arith.constant 0 : index
    %c0_8 = arith.constant 0 : index
    %13 = vector.load %arg4[%c0_7, %c0_8] : memref<32x32xbf16, #tpu.memory_space<vmem>>, vector<32x32xbf16>
    %cst_9 = arith.constant 0.000000e+00 : f32
    %14 = vector.broadcast %cst_9 : f32 to vector<8x32xf32>
    %c0_10 = arith.constant 0 : index
    %c0_11 = arith.constant 0 : index
    %15 = vector.load %arg5[%c0_10, %c0_11] : memref<1x32xf32, #tpu.memory_space<vmem>>, vector<1x32xf32>
    %16 = vector.broadcast %15 : vector<1x32xf32> to vector<8x32xf32>
    %17 = arith.addf %14, %16 : vector<8x32xf32>
    %18 = vector.extract_strided_slice %10 {offsets = [0, 0], sizes = [8, 8], strides = [1, 1]} : vector<8x32xf32> to vector<8x8xf32>
    %19 = vector.extract_strided_slice %11 {offsets = [0, 0], sizes = [8, 8], strides = [1, 1]} : vector<8x32xf32> to vector<8x8xf32>
    %20 = vector.extract_strided_slice %12 {offsets = [0, 0], sizes = [8, 8], strides = [1, 1]} : vector<8x32xf32> to vector<8x8xf32>
    %21 = arith.truncf %18 : vector<8x8xf32> to vector<8x8xbf16>
    %22 = arith.truncf %19 : vector<8x8xf32> to vector<8x8xbf16>
    %cst_12 = arith.constant dense<0.000000e+00> : vector<8x8xf32>
    %23 = tpu.matmul %21, %22, %cst_12 {dimension_numbers = #tpu.dot_dimension_numbers<[1], [1], [0], [0], [0, 0, 1, 0], [], []>} : vector<8x8xbf16>, vector<8x8xbf16>, vector<8x8xf32> -> vector<8x8xf32>
    %cst_13 = arith.constant dense<0xFF800000> : vector<8xf32>
    %24 = vector.multi_reduction <maximumf>, %23, %cst_13 [1] : vector<8x8xf32> to vector<8xf32>
    %25 = vector.shape_cast %24 : vector<8xf32> to vector<8x1xf32>
    %26 = vector.broadcast %25 : vector<8x1xf32> to vector<8x8xf32>
    %27 = arith.subf %23, %26 : vector<8x8xf32>
    %28 = math.exp %27 : vector<8x8xf32>
    %cst_14 = arith.constant dense<0.000000e+00> : vector<8xf32>
    %29 = vector.multi_reduction <add>, %28, %cst_14 [1] : vector<8x8xf32> to vector<8xf32>
    %30 = vector.shape_cast %29 : vector<8xf32> to vector<8x1xf32>
    %31 = tpu.reciprocal %30 {approx = true} : vector<8x1xf32> -> vector<8x1xf32>
    %32 = vector.broadcast %31 : vector<8x1xf32> to vector<8x8xf32>
    %33 = arith.mulf %28, %32 : vector<8x8xf32>
    %34 = arith.truncf %33 : vector<8x8xf32> to vector<8x8xbf16>
    %35 = arith.truncf %20 : vector<8x8xf32> to vector<8x8xbf16>
    %cst_15 = arith.constant dense<0.000000e+00> : vector<8x8xf32>
    %36 = tpu.matmul %34, %35, %cst_15 {dimension_numbers = #tpu.dot_dimension_numbers<[1], [0], [0], [1], [0, 0, 1, 1], [], []>} : vector<8x8xbf16>, vector<8x8xbf16>, vector<8x8xf32> -> vector<8x8xf32>
    %37 = arith.truncf %36 : vector<8x8xf32> to vector<8x8xbf16>
    %38 = vector.extract_strided_slice %13 {offsets = [0, 0], sizes = [8, 32], strides = [1, 1]} : vector<32x32xbf16> to vector<8x32xbf16>
    %cst_16 = arith.constant dense<0.000000e+00> : vector<8x32xf32>
    %39 = tpu.matmul %37, %38, %cst_16 {dimension_numbers = #tpu.dot_dimension_numbers<[1], [0], [0], [1], [0, 0, 1, 1], [], []>} : vector<8x8xbf16>, vector<8x32xbf16>, vector<8x32xf32> -> vector<8x32xf32>
    %40 = arith.addf %17, %39 : vector<8x32xf32>
    %41 = vector.extract_strided_slice %10 {offsets = [0, 8], sizes = [8, 8], strides = [1, 1]} : vector<8x32xf32> to vector<8x8xf32>
    %42 = vector.extract_strided_slice %11 {offsets = [0, 8], sizes = [8, 8], strides = [1, 1]} : vector<8x32xf32> to vector<8x8xf32>
    %43 = vector.extract_strided_slice %12 {offsets = [0, 8], sizes = [8, 8], strides = [1, 1]} : vector<8x32xf32> to vector<8x8xf32>
    %44 = arith.truncf %41 : vector<8x8xf32> to vector<8x8xbf16>
    %45 = arith.truncf %42 : vector<8x8xf32> to vector<8x8xbf16>
    %cst_17 = arith.constant dense<0.000000e+00> : vector<8x8xf32>
    %46 = tpu.matmul %44, %45, %cst_17 {dimension_numbers = #tpu.dot_dimension_numbers<[1], [1], [0], [0], [0, 0, 1, 0], [], []>} : vector<8x8xbf16>, vector<8x8xbf16>, vector<8x8xf32> -> vector<8x8xf32>
    %cst_18 = arith.constant dense<0xFF800000> : vector<8xf32>
    %47 = vector.multi_reduction <maximumf>, %46, %cst_18 [1] : vector<8x8xf32> to vector<8xf32>
    %48 = vector.shape_cast %47 : vector<8xf32> to vector<8x1xf32>
    %49 = vector.broadcast %48 : vector<8x1xf32> to vector<8x8xf32>
    %50 = arith.subf %46, %49 : vector<8x8xf32>
    %51 = math.exp %50 : vector<8x8xf32>
    %cst_19 = arith.constant dense<0.000000e+00> : vector<8xf32>
    %52 = vector.multi_reduction <add>, %51, %cst_19 [1] : vector<8x8xf32> to vector<8xf32>
    %53 = vector.shape_cast %52 : vector<8xf32> to vector<8x1xf32>
    %54 = tpu.reciprocal %53 {approx = true} : vector<8x1xf32> -> vector<8x1xf32>
    %55 = vector.broadcast %54 : vector<8x1xf32> to vector<8x8xf32>
    %56 = arith.mulf %51, %55 : vector<8x8xf32>
    %57 = arith.truncf %56 : vector<8x8xf32> to vector<8x8xbf16>
    %58 = arith.truncf %43 : vector<8x8xf32> to vector<8x8xbf16>
    %cst_20 = arith.constant dense<0.000000e+00> : vector<8x8xf32>
    %59 = tpu.matmul %57, %58, %cst_20 {dimension_numbers = #tpu.dot_dimension_numbers<[1], [0], [0], [1], [0, 0, 1, 1], [], []>} : vector<8x8xbf16>, vector<8x8xbf16>, vector<8x8xf32> -> vector<8x8xf32>
    %60 = arith.truncf %59 : vector<8x8xf32> to vector<8x8xbf16>
    %61 = vector.extract_strided_slice %13 {offsets = [8, 0], sizes = [8, 32], strides = [1, 1]} : vector<32x32xbf16> to vector<8x32xbf16>
    %cst_21 = arith.constant dense<0.000000e+00> : vector<8x32xf32>
    %62 = tpu.matmul %60, %61, %cst_21 {dimension_numbers = #tpu.dot_dimension_numbers<[1], [0], [0], [1], [0, 0, 1, 1], [], []>} : vector<8x8xbf16>, vector<8x32xbf16>, vector<8x32xf32> -> vector<8x32xf32>
    %63 = arith.addf %40, %62 : vector<8x32xf32>
    %64 = vector.extract_strided_slice %10 {offsets = [0, 16], sizes = [8, 8], strides = [1, 1]} : vector<8x32xf32> to vector<8x8xf32>
    %65 = vector.extract_strided_slice %11 {offsets = [0, 16], sizes = [8, 8], strides = [1, 1]} : vector<8x32xf32> to vector<8x8xf32>
    %66 = vector.extract_strided_slice %12 {offsets = [0, 16], sizes = [8, 8], strides = [1, 1]} : vector<8x32xf32> to vector<8x8xf32>
    %67 = arith.truncf %64 : vector<8x8xf32> to vector<8x8xbf16>
    %68 = arith.truncf %65 : vector<8x8xf32> to vector<8x8xbf16>
    %cst_22 = arith.constant dense<0.000000e+00> : vector<8x8xf32>
    %69 = tpu.matmul %67, %68, %cst_22 {dimension_numbers = #tpu.dot_dimension_numbers<[1], [1], [0], [0], [0, 0, 1, 0], [], []>} : vector<8x8xbf16>, vector<8x8xbf16>, vector<8x8xf32> -> vector<8x8xf32>
    %cst_23 = arith.constant dense<0xFF800000> : vector<8xf32>
    %70 = vector.multi_reduction <maximumf>, %69, %cst_23 [1] : vector<8x8xf32> to vector<8xf32>
    %71 = vector.shape_cast %70 : vector<8xf32> to vector<8x1xf32>
    %72 = vector.broadcast %71 : vector<8x1xf32> to vector<8x8xf32>
    %73 = arith.subf %69, %72 : vector<8x8xf32>
    %74 = math.exp %73 : vector<8x8xf32>
    %cst_24 = arith.constant dense<0.000000e+00> : vector<8xf32>
    %75 = vector.multi_reduction <add>, %74, %cst_24 [1] : vector<8x8xf32> to vector<8xf32>
    %76 = vector.shape_cast %75 : vector<8xf32> to vector<8x1xf32>
    %77 = tpu.reciprocal %76 {approx = true} : vector<8x1xf32> -> vector<8x1xf32>
    %78 = vector.broadcast %77 : vector<8x1xf32> to vector<8x8xf32>
    %79 = arith.mulf %74, %78 : vector<8x8xf32>
    %80 = arith.truncf %79 : vector<8x8xf32> to vector<8x8xbf16>
    %81 = arith.truncf %66 : vector<8x8xf32> to vector<8x8xbf16>
    %cst_25 = arith.constant dense<0.000000e+00> : vector<8x8xf32>
    %82 = tpu.matmul %80, %81, %cst_25 {dimension_numbers = #tpu.dot_dimension_numbers<[1], [0], [0], [1], [0, 0, 1, 1], [], []>} : vector<8x8xbf16>, vector<8x8xbf16>, vector<8x8xf32> -> vector<8x8xf32>
    %83 = arith.truncf %82 : vector<8x8xf32> to vector<8x8xbf16>
    %84 = vector.extract_strided_slice %13 {offsets = [16, 0], sizes = [8, 32], strides = [1, 1]} : vector<32x32xbf16> to vector<8x32xbf16>
    %cst_26 = arith.constant dense<0.000000e+00> : vector<8x32xf32>
    %85 = tpu.matmul %83, %84, %cst_26 {dimension_numbers = #tpu.dot_dimension_numbers<[1], [0], [0], [1], [0, 0, 1, 1], [], []>} : vector<8x8xbf16>, vector<8x32xbf16>, vector<8x32xf32> -> vector<8x32xf32>
    %86 = arith.addf %63, %85 : vector<8x32xf32>
    %87 = vector.extract_strided_slice %10 {offsets = [0, 24], sizes = [8, 8], strides = [1, 1]} : vector<8x32xf32> to vector<8x8xf32>
    %88 = vector.extract_strided_slice %11 {offsets = [0, 24], sizes = [8, 8], strides = [1, 1]} : vector<8x32xf32> to vector<8x8xf32>
    %89 = vector.extract_strided_slice %12 {offsets = [0, 24], sizes = [8, 8], strides = [1, 1]} : vector<8x32xf32> to vector<8x8xf32>
    %90 = arith.truncf %87 : vector<8x8xf32> to vector<8x8xbf16>
    %91 = arith.truncf %88 : vector<8x8xf32> to vector<8x8xbf16>
    %cst_27 = arith.constant dense<0.000000e+00> : vector<8x8xf32>
    %92 = tpu.matmul %90, %91, %cst_27 {dimension_numbers = #tpu.dot_dimension_numbers<[1], [1], [0], [0], [0, 0, 1, 0], [], []>} : vector<8x8xbf16>, vector<8x8xbf16>, vector<8x8xf32> -> vector<8x8xf32>
    %cst_28 = arith.constant dense<0xFF800000> : vector<8xf32>
    %93 = vector.multi_reduction <maximumf>, %92, %cst_28 [1] : vector<8x8xf32> to vector<8xf32>
    %94 = vector.shape_cast %93 : vector<8xf32> to vector<8x1xf32>
    %95 = vector.broadcast %94 : vector<8x1xf32> to vector<8x8xf32>
    %96 = arith.subf %92, %95 : vector<8x8xf32>
    %97 = math.exp %96 : vector<8x8xf32>
    %cst_29 = arith.constant dense<0.000000e+00> : vector<8xf32>
    %98 = vector.multi_reduction <add>, %97, %cst_29 [1] : vector<8x8xf32> to vector<8xf32>
    %99 = vector.shape_cast %98 : vector<8xf32> to vector<8x1xf32>
    %100 = tpu.reciprocal %99 {approx = true} : vector<8x1xf32> -> vector<8x1xf32>
    %101 = vector.broadcast %100 : vector<8x1xf32> to vector<8x8xf32>
    %102 = arith.mulf %97, %101 : vector<8x8xf32>
    %103 = arith.truncf %102 : vector<8x8xf32> to vector<8x8xbf16>
    %104 = arith.truncf %89 : vector<8x8xf32> to vector<8x8xbf16>
    %cst_30 = arith.constant dense<0.000000e+00> : vector<8x8xf32>
    %105 = tpu.matmul %103, %104, %cst_30 {dimension_numbers = #tpu.dot_dimension_numbers<[1], [0], [0], [1], [0, 0, 1, 1], [], []>} : vector<8x8xbf16>, vector<8x8xbf16>, vector<8x8xf32> -> vector<8x8xf32>
    %106 = arith.truncf %105 : vector<8x8xf32> to vector<8x8xbf16>
    %107 = vector.extract_strided_slice %13 {offsets = [24, 0], sizes = [8, 32], strides = [1, 1]} : vector<32x32xbf16> to vector<8x32xbf16>
    %cst_31 = arith.constant dense<0.000000e+00> : vector<8x32xf32>
    %108 = tpu.matmul %106, %107, %cst_31 {dimension_numbers = #tpu.dot_dimension_numbers<[1], [0], [0], [1], [0, 0, 1, 1], [], []>} : vector<8x8xbf16>, vector<8x32xbf16>, vector<8x32xf32> -> vector<8x32xf32>
    %109 = arith.addf %86, %108 : vector<8x32xf32>
    %c0_32 = arith.constant 0 : index
    %c0_33 = arith.constant 0 : index
    %110 = vector.load %arg10[%c0_32, %c0_33] : memref<1x32xf32, #tpu.memory_space<vmem>>, vector<1x32xf32>
    %c0_34 = arith.constant 0 : index
    %c0_35 = arith.constant 0 : index
    %111 = vector.load %arg11[%c0_34, %c0_35] : memref<1x32xf32, #tpu.memory_space<vmem>>, vector<1x32xf32>
    %112 = arith.addf %1, %109 : vector<8x32xf32>
    %cst_36 = arith.constant dense<0.000000e+00> : vector<8xf32>
    %113 = vector.multi_reduction <add>, %112, %cst_36 [1] : vector<8x32xf32> to vector<8xf32>
    %114 = vector.shape_cast %113 : vector<8xf32> to vector<8x1xf32>
    %cst_37 = arith.constant 3.200000e+01 : f32
    %115 = vector.broadcast %cst_37 : f32 to vector<8x1xf32>
    %116 = arith.divf %114, %115 : vector<8x1xf32>
    %117 = vector.broadcast %116 : vector<8x1xf32> to vector<8x32xf32>
    %118 = arith.subf %112, %117 : vector<8x32xf32>
    %119 = vector.broadcast %116 : vector<8x1xf32> to vector<8x32xf32>
    %120 = arith.subf %112, %119 : vector<8x32xf32>
    %121 = arith.mulf %118, %120 : vector<8x32xf32>
    %cst_38 = arith.constant dense<0.000000e+00> : vector<8xf32>
    %122 = vector.multi_reduction <add>, %121, %cst_38 [1] : vector<8x32xf32> to vector<8xf32>
    %123 = vector.shape_cast %122 : vector<8xf32> to vector<8x1xf32>
    %cst_39 = arith.constant 3.200000e+01 : f32
    %124 = vector.broadcast %cst_39 : f32 to vector<8x1xf32>
    %125 = arith.divf %123, %124 : vector<8x1xf32>
    %126 = vector.broadcast %116 : vector<8x1xf32> to vector<8x32xf32>
    %127 = arith.subf %112, %126 : vector<8x32xf32>
    %cst_40 = arith.constant 9.99999974E-6 : f32
    %128 = vector.broadcast %cst_40 : f32 to vector<8x1xf32>
    %129 = arith.addf %125, %128 : vector<8x1xf32>
    %130 = math.rsqrt %129 : vector<8x1xf32>
    %131 = vector.broadcast %130 : vector<8x1xf32> to vector<8x32xf32>
    %132 = arith.mulf %127, %131 : vector<8x32xf32>
    %133 = vector.broadcast %110 : vector<1x32xf32> to vector<8x32xf32>
    %134 = arith.mulf %132, %133 : vector<8x32xf32>
    %135 = vector.broadcast %111 : vector<1x32xf32> to vector<8x32xf32>
    %136 = arith.addf %134, %135 : vector<8x32xf32>
    %137 = arith.truncf %136 : vector<8x32xf32> to vector<8x32xbf16>
    %c0_41 = arith.constant 0 : index
    %c0_42 = arith.constant 0 : index
    %138 = vector.load %arg6[%c0_41, %c0_42] : memref<32x64xbf16, #tpu.memory_space<vmem>>, vector<32x64xbf16>
    %cst_43 = arith.constant dense<0.000000e+00> : vector<8x64xf32>
    %139 = tpu.matmul %137, %138, %cst_43 {dimension_numbers = #tpu.dot_dimension_numbers<[1], [0], [0], [1], [0, 0, 1, 1], [], []>} : vector<8x32xbf16>, vector<32x64xbf16>, vector<8x64xf32> -> vector<8x64xf32>
    %c0_44 = arith.constant 0 : index
    %c0_45 = arith.constant 0 : index
    %140 = vector.load %arg7[%c0_44, %c0_45] : memref<1x64xf32, #tpu.memory_space<vmem>>, vector<1x64xf32>
    %141 = vector.broadcast %140 : vector<1x64xf32> to vector<8x64xf32>
    %142 = arith.addf %139, %141 : vector<8x64xf32>
    %cst_46 = arith.constant 0.000000e+00 : f32
    %143 = vector.broadcast %cst_46 : f32 to vector<8x64xf32>
    %144 = arith.maximumf %142, %143 : vector<8x64xf32>
    %145 = arith.truncf %144 : vector<8x64xf32> to vector<8x64xbf16>
    %c0_47 = arith.constant 0 : index
    %c0_48 = arith.constant 0 : index
    %146 = vector.load %arg8[%c0_47, %c0_48] : memref<64x32xbf16, #tpu.memory_space<vmem>>, vector<64x32xbf16>
    %cst_49 = arith.constant dense<0.000000e+00> : vector<8x32xf32>
    %147 = tpu.matmul %145, %146, %cst_49 {dimension_numbers = #tpu.dot_dimension_numbers<[1], [0], [0], [1], [0, 0, 1, 1], [], []>} : vector<8x64xbf16>, vector<64x32xbf16>, vector<8x32xf32> -> vector<8x32xf32>
    %c0_50 = arith.constant 0 : index
    %c0_51 = arith.constant 0 : index
    %148 = vector.load %arg9[%c0_50, %c0_51] : memref<1x32xf32, #tpu.memory_space<vmem>>, vector<1x32xf32>
    %149 = vector.broadcast %148 : vector<1x32xf32> to vector<8x32xf32>
    %150 = arith.addf %147, %149 : vector<8x32xf32>
    %151 = arith.addf %136, %150 : vector<8x32xf32>
    %cst_52 = arith.constant dense<0.000000e+00> : vector<8xf32>
    %152 = vector.multi_reduction <add>, %151, %cst_52 [1] : vector<8x32xf32> to vector<8xf32>
    %153 = vector.shape_cast %152 : vector<8xf32> to vector<8x1xf32>
    %cst_53 = arith.constant 3.200000e+01 : f32
    %154 = vector.broadcast %cst_53 : f32 to vector<8x1xf32>
    %155 = arith.divf %153, %154 : vector<8x1xf32>
    %156 = vector.broadcast %155 : vector<8x1xf32> to vector<8x32xf32>
    %157 = arith.subf %151, %156 : vector<8x32xf32>
    %158 = vector.broadcast %155 : vector<8x1xf32> to vector<8x32xf32>
    %159 = arith.subf %151, %158 : vector<8x32xf32>
    %160 = arith.mulf %157, %159 : vector<8x32xf32>
    %cst_54 = arith.constant dense<0.000000e+00> : vector<8xf32>
    %161 = vector.multi_reduction <add>, %160, %cst_54 [1] : vector<8x32xf32> to vector<8xf32>
    %162 = vector.shape_cast %161 : vector<8xf32> to vector<8x1xf32>
    %cst_55 = arith.constant 3.200000e+01 : f32
    %163 = vector.broadcast %cst_55 : f32 to vector<8x1xf32>
    %164 = arith.divf %162, %163 : vector<8x1xf32>
    %165 = vector.broadcast %155 : vector<8x1xf32> to vector<8x32xf32>
    %166 = arith.subf %151, %165 : vector<8x32xf32>
    %cst_56 = arith.constant 9.99999974E-6 : f32
    %167 = vector.broadcast %cst_56 : f32 to vector<8x1xf32>
    %168 = arith.addf %164, %167 : vector<8x1xf32>
    %169 = math.rsqrt %168 : vector<8x1xf32>
    %170 = vector.broadcast %169 : vector<8x1xf32> to vector<8x32xf32>
    %171 = arith.mulf %166, %170 : vector<8x32xf32>
    %172 = vector.broadcast %110 : vector<1x32xf32> to vector<8x32xf32>
    %173 = arith.mulf %171, %172 : vector<8x32xf32>
    %174 = vector.broadcast %111 : vector<1x32xf32> to vector<8x32xf32>
    %175 = arith.addf %173, %174 : vector<8x32xf32>
    %c0_57 = arith.constant 0 : index
    %c0_58 = arith.constant 0 : index
    %c0_59 = arith.constant 0 : index
    %176 = vector.load %arg12[%c0_57, %c0_58, %c0_59] : memref<1x8x32xf32, #tpu.memory_space<vmem>>, vector<1x8x32xf32>
    %177 = vector.shape_cast %176 : vector<1x8x32xf32> to vector<8x32xf32>
    %178 = vector.shape_cast %175 : vector<8x32xf32> to vector<1x8x32xf32>
    tpu.vector_store %arg12[%c0_57, %c0_58, %c0_59], %178 {strides = array<i32>} : memref<1x8x32xf32, #tpu.memory_space<vmem>>, vector<1x8x32xf32>,
    return
  }
  func.func @transform_0(%arg0: i32) -> (i32, i32, i32) {
    %c0_i32 = arith.constant 0 : i32
    %c0_i32_0 = arith.constant 0 : i32
    %c0_i32_1 = arith.constant 0 : i32
    return %arg0, %c0_i32, %c0_i32_0 : i32, i32, i32
  }
  func.func @transform_1(%arg0: i32) -> (i32, i32) {
    %c0_i32 = arith.constant 0 : i32
    %c0_i32_0 = arith.constant 0 : i32
    %c0_i32_1 = arith.constant 0 : i32
    return %c0_i32, %c0_i32_0 : i32, i32
  }
  func.func @transform_2(%arg0: i32) -> (i32, i32) {
    %c0_i32 = arith.constant 0 : i32
    %c0_i32_0 = arith.constant 0 : i32
    %c0_i32_1 = arith.constant 0 : i32
    return %c0_i32, %c0_i32_0 : i32, i32
  }
  func.func @transform_3(%arg0: i32) -> (i32, i32) {
    %c0_i32 = arith.constant 0 : i32
    %c0_i32_0 = arith.constant 0 : i32
    %c0_i32_1 = arith.constant 0 : i32
    return %c0_i32, %c0_i32_0 : i32, i32
  }
  func.func @transform_4(%arg0: i32) -> (i32, i32) {
    %c0_i32 = arith.constant 0 : i32
    %c0_i32_0 = arith.constant 0 : i32
    %c0_i32_1 = arith.constant 0 : i32
    return %c0_i32, %c0_i32_0 : i32, i32
  }
  func.func @transform_5(%arg0: i32) -> (i32, i32) {
    %c0_i32 = arith.constant 0 : i32
    %c0_i32_0 = arith.constant 0 : i32
    %c0_i32_1 = arith.constant 0 : i32
    return %c0_i32, %c0_i32_0 : i32, i32
  }
  func.func @transform_6(%arg0: i32) -> (i32, i32) {
    %c0_i32 = arith.constant 0 : i32
    %c0_i32_0 = arith.constant 0 : i32
    %c0_i32_1 = arith.constant 0 : i32
    return %c0_i32, %c0_i32_0 : i32, i32
  }
  func.func @transform_7(%arg0: i32) -> (i32, i32) {
    %c0_i32 = arith.constant 0 : i32
    %c0_i32_0 = arith.constant 0 : i32
    %c0_i32_1 = arith.constant 0 : i32
    return %c0_i32, %c0_i32_0 : i32, i32
  }
  func.func @transform_8(%arg0: i32) -> (i32, i32) {
    %c0_i32 = arith.constant 0 : i32
    %c0_i32_0 = arith.constant 0 : i32
    %c0_i32_1 = arith.constant 0 : i32
    return %c0_i32, %c0_i32_0 : i32, i32
  }
  func.func @transform_9(%arg0: i32) -> (i32, i32) {
    %c0_i32 = arith.constant 0 : i32
    %c0_i32_0 = arith.constant 0 : i32
    %c0_i32_1 = arith.constant 0 : i32
    return %c0_i32, %c0_i32_0 : i32, i32
  }
  func.func @transform_10(%arg0: i32) -> (i32, i32) {
    %c0_i32 = arith.constant 0 : i32
    %c0_i32_0 = arith.constant 0 : i32
    %c0_i32_1 = arith.constant 0 : i32
    return %c0_i32, %c0_i32_0 : i32, i32
  }
  func.func @transform_11(%arg0: i32) -> (i32, i32, i32) {
    %c0_i32 = arith.constant 0 : i32
    %c0_i32_0 = arith.constant 0 : i32
    %c0_i32_1 = arith.constant 0 : i32
    return %arg0, %c0_i32, %c0_i32_0 : i32, i32, i32
  }
}

</mosaic_0001>

<llo_original>
// kernel: trans_encoder_forward.4
$region0: #{trans_encoder_forward.4}
  #allocation0 [shape = 'u32[]', space=smem, size = 0x4, offset = 0x4, fixed_abs, tag = 'smem constant byte address 0x4 - core index']
  #allocation1 [shape = 'u32[72,128]{1,0:T(1,128)}', space=vmem, size = 0x9000, scoped, tag = 'internal scratch']
  %s0 = inlined_call_operand.vmem [shape: f32[16,16], index: 0, kind: input, shape index: {}]
  %s1 = inlined_call_operand.vmem [shape: bf16[16,32], index: 1, kind: input, shape index: {}]
  %s2 = inlined_call_operand.vmem [shape: f32[1,32], index: 2, kind: input, shape index: {}]
  %s3 = inlined_call_operand.vmem [shape: f32[16,32], index: 3, kind: output, shape index: {}]
  %s4 = sld [smem:[#allocation0]]
  $region22: #{trans_encoder_forward.4} parent=0
    _
  %s6 = ssub.s32 1, %s4
  %s7 = scalar_select 0, %s6, %s4
  // Predicated region
  $region2: #{trans_encoder_forward.4} parent=0 // pred_check
    _
  $region3: #{trans_encoder_forward.4} parent=0 // pred_check_branch
    %9 = sbr.rel (0) target = $region5
  $region4: #{trans_encoder_forward.4} parent=0 // pred_region
    _
  $region5: #{trans_encoder_forward.4} parent=0 // pred_fallthru
    _
  // Predicated region
  $region6: #{trans_encoder_forward.4} parent=0 // pred_check
    _
  $region7: #{trans_encoder_forward.4} parent=0 // pred_check_branch
    %11 = sbr.rel (0) target = $region9
  $region8: #{trans_encoder_forward.4} parent=0 // pred_region
    _
  $region9: #{trans_encoder_forward.4} parent=0 // pred_fallthru
    _
  // Predicated region
  $region10: #{trans_encoder_forward.4} parent=0 // pred_check
    _
  $region11: #{trans_encoder_forward.4} parent=0 // pred_check_branch
    %13 = sbr.rel (0) target = $region13
  $region12: #{trans_encoder_forward.4} parent=0 // pred_region
    _
  $region13: #{trans_encoder_forward.4} parent=0 // pred_fallthru
    _
  %v15 = vld [vmem:[%s0] sm:$0xff]
  %v16 = vld [vmem:[%s0 + $0x8] sm:$0xff]
  %v17 = vpack.c.bf16 %v16, %v15
  %v18 = vld [vmem:[%s1] sm:$0xf]
  %v19 = vld [vmem:[%s1 + $0x4] sm:$0xf]
  %v20 = vld [vmem:[%s2] sm:$0x1]
  %v22 = vperm.slane %v20, 0
  %v26 = vunpack.c.l.b16 %v18
  %v27 = vunpack.c.l.b16 %v19
  %v28 = vpack.c.b16 %v27, %v26
  %vm30 = vcmask 130048
  %v32 = vsel %vm30, %v17, 0
  %34 = vmatpush.bf16.msra.mxu0 0
  %35 = vmatpush.bf16.msra.mxu0 0
  %36 = vmatpush.bf16.msra.mxu0 0
  %37 = vmatpush.bf16.msra.mxu0 0
  %38 = vmatpush.bf16.msra.mxu0 0
  %39 = vmatpush.bf16.msra.mxu0 0
  %40 = vmatpush.bf16.msra.mxu0 0
  %41 = vmatpush.bf16.msra.mxu0 %v28
  %42 = vmatmul.bf16.gmra.mxu0 %v32
  %v43 = vpop.f32.mrf.mxu0
  %v44 = vadd.f32 %v22, %v43
  %v45 = vpop.f32.mrf.mxu0
  %v46 = vadd.f32 %v22, %v45
  %47 = vdwg.mxu0
  %v48 = vmax.f32 %v44, 0.0
  %v49 = vmax.f32 %v46, 0.0
  %vm50 = vcmask 261120
  %51 = vst.msk [vmem:[%s3] sm:$0xff] %vm50, %v48
  %52 = vst.msk [vmem:[%s3 + $0x8] sm:$0xff] %vm50, %v49
  // Predicated region
  $region14: #{trans_encoder_forward.4} parent=0 // pred_check
    _
  $region15: #{trans_encoder_forward.4} parent=0 // pred_check_branch
    %54 = sbr.rel (0) target = $region17
  $region16: #{trans_encoder_forward.4} parent=0 // pred_region
    _
  $region17: #{trans_encoder_forward.4} parent=0 // pred_fallthru
    _
  // Predicated region
  $region18: #{trans_encoder_forward.4} parent=0 // pred_check
    _
  $region19: #{trans_encoder_forward.4} parent=0 // pred_check_branch
    %56 = sbr.rel (0) target = $region21
  $region20: #{trans_encoder_forward.4} parent=0 // pred_region
    _
  $region21: #{trans_encoder_forward.4} parent=0 // pred_fallthru
    _

// kernel: trans_encoder_forward.7
$region0: #{trans_encoder_forward.7}
  #allocation0 [shape = 'u32[]', space=smem, size = 0x4, offset = 0x4, fixed_abs, tag = 'smem constant byte address 0x4 - core index']
  #allocation1 [shape = 'u32[72,128]{1,0:T(1,128)}', space=vmem, size = 0x9000, scoped, tag = 'internal scratch']
  %s0 = inlined_call_operand.vmem [shape: f32[16,32], index: 0, kind: input, shape index: {}]
  %s1 = inlined_call_operand.vmem [shape: f32[1,32], index: 1, kind: input, shape index: {}]
  %s2 = inlined_call_operand.vmem [shape: f32[1,32], index: 2, kind: input, shape index: {}]
  %s3 = inlined_call_operand.vmem [shape: bf16[32,16], index: 3, kind: input, shape index: {}]
  %s4 = inlined_call_operand.vmem [shape: f32[1,16], index: 4, kind: input, shape index: {}]
  %s5 = inlined_call_operand.vmem [shape: f32[16,32], index: 5, kind: output, shape index: {0}]
  %s6 = inlined_call_operand.vmem [shape: f32[16,16], index: 6, kind: output, shape index: {1}]
  %7 = xla_tuple %s5, %s6
  %s8 = sld [smem:[#allocation0]]
  $region38: #{trans_encoder_forward.7} parent=0
    _
  %s10 = ssub.s32 1, %s8
  %s11 = scalar_select 0, %s10, %s8
  // Predicated region
  $region2: #{trans_encoder_forward.7} parent=0 // pred_check
    _
  $region3: #{trans_encoder_forward.7} parent=0 // pred_check_branch
    %13 = sbr.rel (0) target = $region5
  $region4: #{trans_encoder_forward.7} parent=0 // pred_region
    _
  $region5: #{trans_encoder_forward.7} parent=0 // pred_fallthru
    _
  // Predicated region
  $region6: #{trans_encoder_forward.7} parent=0 // pred_check
    _
  $region7: #{trans_encoder_forward.7} parent=0 // pred_check_branch
    %15 = sbr.rel (0) target = $region9
  $region8: #{trans_encoder_forward.7} parent=0 // pred_region
    _
  $region9: #{trans_encoder_forward.7} parent=0 // pred_fallthru
    _
  // Predicated region
  $region10: #{trans_encoder_forward.7} parent=0 // pred_check
    _
  $region11: #{trans_encoder_forward.7} parent=0 // pred_check_branch
    %17 = sbr.rel (0) target = $region13
  $region12: #{trans_encoder_forward.7} parent=0 // pred_region
    _
  $region13: #{trans_encoder_forward.7} parent=0 // pred_fallthru
    _
  // Predicated region
  $region14: #{trans_encoder_forward.7} parent=0 // pred_check
    _
  $region15: #{trans_encoder_forward.7} parent=0 // pred_check_branch
    %19 = sbr.rel (0) target = $region17
  $region16: #{trans_encoder_forward.7} parent=0 // pred_region
    _
  $region17: #{trans_encoder_forward.7} parent=0 // pred_fallthru
    _
  // Predicated region
  $region18: #{trans_encoder_forward.7} parent=0 // pred_check
    _
  $region19: #{trans_encoder_forward.7} parent=0 // pred_check_branch
    %21 = sbr.rel (0) target = $region21
  $region20: #{trans_encoder_forward.7} parent=0 // pred_region
    _
  $region21: #{trans_encoder_forward.7} parent=0 // pred_fallthru
    _
  %v23 = vld [vmem:[%s0] sm:$0xff]
  %v24 = vld [vmem:[%s0 + $0x8] sm:$0xff]
  %vm25 = vcmask 261120
  %v26 = vsel %vm25, %v23, 0.0
  %27 = vadd.xlane.f32.xlu0 %v26
  %v28 = vpop.xlane.xlu0 %27
  %v29 = vsel %vm25, %v24, 0.0
  %30 = vadd.xlane.f32.xlu0 %v29
  %v31 = vpop.xlane.xlu0 %30
  %v32 = vrcp.pop 32.0
  %v33 = vmul.f32 32.0, %v32
  %v34 = vsub.f32 1.0, %v33
  %v35 = vmul.f32 %v32, %v34
  %v36 = vadd.f32 %v32, %v35
  %vm37 = vweird.f32 %v32
  %v38 = vsel %vm37, %v32, %v36
  %v39 = vmul.f32 %v28, %v38
  %v40 = vmul.f32 %v31, %v38
  %v41 = vsub.f32 %v23, %v39
  %v42 = vsub.f32 %v24, %v40
  %v43 = vmul.f32 %v41, %v41
  %v44 = vmul.f32 %v42, %v42
  %v45 = vsel %vm25, %v43, 0.0
  %46 = vadd.xlane.f32.xlu0 %v45
  %v47 = vpop.xlane.xlu0 %46
  %v48 = vsel %vm25, %v44, 0.0
  %49 = vadd.xlane.f32.xlu0 %v48
  %v50 = vpop.xlane.xlu0 %49
  %v51 = vmul.f32 %v47, %v38
  %v52 = vmul.f32 %v50, %v38
  %v53 = vadd.f32 %v51, 1e-05
  %v54 = vadd.f32 %v52, 1e-05
  %v55 = vrsqrt.pop %v53
  %v56 = vmul.f32 %v55, %v53
  %v57 = vmul.f32 %v56, %v55
  %v58 = vmul.f32 0.5, %v57
  %v59 = vsub.f32 1.5, %v58
  %v60 = vmul.f32 %v55, %v59
  %vm61 = vweird.f32 %v53
  %vm62 = vweird.f32 %v55
  %vm63 = vmor %vm61, %vm62
  %v64 = vsel %vm63, %v55, %v60
  %v65 = vrsqrt.pop %v54
  %v66 = vmul.f32 %v65, %v54
  %v67 = vmul.f32 %v66, %v65
  %v68 = vmul.f32 0.5, %v67
  %v69 = vsub.f32 1.5, %v68
  %v70 = vmul.f32 %v65, %v69
  %vm71 = vweird.f32 %v54
  %vm72 = vweird.f32 %v65
  %vm73 = vmor %vm71, %vm72
  %v74 = vsel %vm73, %v65, %v70
  %v75 = vmul.f32 %v41, %v64
  %v76 = vmul.f32 %v42, %v74
  %v77 = vld [vmem:[%s1] sm:$0x1]
  %v79 = vperm.slane %v77, 0
  %v81 = vmul.f32 %v75, %v79
  %v82 = vmul.f32 %v76, %v79
  %v83 = vld [vmem:[%s2] sm:$0x1]
  %v85 = vperm.slane %v83, 0
  %v87 = vadd.f32 %v81, %v85
  %v88 = vadd.f32 %v82, %v85
  %89 = vst.msk [vmem:[%s5] sm:$0xff] %vm25, %v87
  %90 = vst.msk [vmem:[%s5 + $0x8] sm:$0xff] %vm25, %v88
  %v91 = vpack.c.bf16 %v88, %v87
  %v92 = vld [vmem:[%s3] sm:$0xf]
  %v93 = vld [vmem:[%s3 + $0x4] sm:$0xf]
  %v94 = vld [vmem:[%s3 + $0x8] sm:$0xf]
  %v95 = vld [vmem:[%s3 + $0xc] sm:$0xf]
  %v96 = vld [vmem:[%s4] sm:$0x1]
  %v98 = vperm.slane %v96, 0
  %v104 = vunpack.c.l.b16 %v92
  %v105 = vunpack.c.l.b16 %v93
  %v106 = vunpack.c.l.b16 %v94
  %v107 = vunpack.c.l.b16 %v95
  %v108 = vpack.c.b16 %v105, %v104
  %v109 = vpack.c.b16 %v107, %v106
  %v113 = vsel %vm25, %v91, 0
  %115 = vmatpush.bf16.msra.mxu0 0
  %116 = vmatpush.bf16.msra.mxu0 0
  %117 = vmatpush.bf16.msra.mxu0 0
  %118 = vmatpush.bf16.msra.mxu0 0
  %119 = vmatpush.bf16.msra.mxu0 0
  %120 = vmatpush.bf16.msra.mxu0 0
  %121 = vmatpush.bf16.msra.mxu0 %v109
  %122 = vmatpush.bf16.msra.mxu0 %v108
  %123 = vmatmul.bf16.gmra.mxu0 %v113
  %v124 = vpop.f32.mrf.mxu0
  %v125 = vadd.f32 %v98, %v124
  %v126 = vpop.f32.mrf.mxu0
  %v127 = vadd.f32 %v98, %v126
  %128 = vdwg.mxu0
  %vm129 = vcmask 130048
  %130 = vst.msk [vmem:[%s6] sm:$0xff] %vm129, %v125
  %131 = vst.msk [vmem:[%s6 + $0x8] sm:$0xff] %vm129, %v127
  // Predicated region
  $region22: #{trans_encoder_forward.7} parent=0 // pred_check
    _
  $region23: #{trans_encoder_forward.7} parent=0 // pred_check_branch
    %133 = sbr.rel (0) target = $region25
  $region24: #{trans_encoder_forward.7} parent=0 // pred_region
    _
  $region25: #{trans_encoder_forward.7} parent=0 // pred_fallthru
    _
  // Predicated region
  $region26: #{trans_encoder_forward.7} parent=0 // pred_check
    _
  $region27: #{trans_encoder_forward.7} parent=0 // pred_check_branch
    %135 = sbr.rel (0) target = $region29
  $region28: #{trans_encoder_forward.7} parent=0 // pred_region
    _
  $region29: #{trans_encoder_forward.7} parent=0 // pred_fallthru
    _
  // Predicated region
  $region30: #{trans_encoder_forward.7} parent=0 // pred_check
    _
  $region31: #{trans_encoder_forward.7} parent=0 // pred_check_branch
    %137 = sbr.rel (0) target = $region33
  $region32: #{trans_encoder_forward.7} parent=0 // pred_region
    _
  $region33: #{trans_encoder_forward.7} parent=0 // pred_fallthru
    _
  // Predicated region
  $region34: #{trans_encoder_forward.7} parent=0 // pred_check
    _
  $region35: #{trans_encoder_forward.7} parent=0 // pred_check_branch
    %139 = sbr.rel (0) target = $region37
  $region36: #{trans_encoder_forward.7} parent=0 // pred_region
    _
  $region37: #{trans_encoder_forward.7} parent=0 // pred_fallthru
    _

// kernel: trans_encoder_forward.5
$region0: #{trans_encoder_forward.5}
  #allocation0 [shape = 'u32[]', space=smem, size = 0x4, offset = 0x4, fixed_abs, tag = 'smem constant byte address 0x4 - core index']
  #allocation1 [shape = 'u32[72,128]{1,0:T(1,128)}', space=vmem, size = 0x9000, scoped, tag = 'internal scratch']
  %s0 = inlined_call_operand.vmem [shape: f32[2,8,32], index: 0, kind: input, shape index: {}]
  %s1 = inlined_call_operand.vmem [shape: bf16[32,96], index: 1, kind: input, shape index: {}]
  %s2 = inlined_call_operand.vmem [shape: f32[1,96], index: 2, kind: input, shape index: {}]
  %s3 = inlined_call_operand.vmem [shape: bf16[32,32], index: 3, kind: input, shape index: {}]
  %s4 = inlined_call_operand.vmem [shape: f32[1,32], index: 4, kind: input, shape index: {}]
  %s5 = inlined_call_operand.vmem [shape: bf16[32,64], index: 5, kind: input, shape index: {}]
  %s6 = inlined_call_operand.vmem [shape: f32[1,64], index: 6, kind: input, shape index: {}]
  %s7 = inlined_call_operand.vmem [shape: bf16[64,32], index: 7, kind: input, shape index: {}]
  %s8 = inlined_call_operand.vmem [shape: f32[1,32], index: 8, kind: input, shape index: {}]
  %s9 = inlined_call_operand.vmem [shape: f32[1,32], index: 9, kind: input, shape index: {}]
  %s10 = inlined_call_operand.vmem [shape: f32[1,32], index: 10, kind: input, shape index: {}]
  %s11 = inlined_call_operand.vmem [shape: f32[2,8,32], index: 11, kind: output, shape index: {}]
  %s12 = sld [smem:[#allocation0]]
  $region77: #{trans_encoder_forward.5} parent=0
    _
  %s14 = ssub.s32 1, %s12
  %s15 = scalar_select 0, %s14, %s12
  loop: start=0, step=1, limit=4
  $region2: #{trans_encoder_forward.5} parent=0 // loop_pre_header
    _
  $region3: #{trans_encoder_forward.5} parent=0 // loop_header
    %s17 = sphi 0, %s21
    %p18 = scmp.ge.s32.totalorder %s17, 4
    %s27 = sphi 0, %s29
    %s30 = sphi 0, %s27
    %s31 = sphi 0, %s30
    %s47 = sphi 0, %s31
    %s51 = sphi 0, %s51
    %s53 = sphi 0, %s51
    %s54 = sphi 0, %s53
    %s68 = sphi 0, %s54
    %s72 = sphi 0, %s72
    %s74 = sphi 0, %s72
    %s75 = sphi 0, %s74
    %s89 = sphi 0, %s75
    %s93 = sphi 0, %s93
    %s95 = sphi 0, %s93
    %s96 = sphi 0, %s95
    %s110 = sphi 0, %s96
    %s114 = sphi 0, %s114
    %s116 = sphi 0, %s114
    %s117 = sphi 0, %s116
    %s131 = sphi 0, %s117
    %s135 = sphi 0, %s135
    %s137 = sphi 0, %s135
    %s138 = sphi 0, %s137
    %s152 = sphi 0, %s138
    %s156 = sphi 0, %s156
    %s158 = sphi 0, %s156
    %s159 = sphi 0, %s158
    %s173 = sphi 0, %s159
    %s177 = sphi 0, %s177
    %s179 = sphi 0, %s177
    %s180 = sphi 0, %s179
    %s194 = sphi 0, %s180
    %s198 = sphi 0, %s198
    %s200 = sphi 0, %s198
    %s201 = sphi 0, %s200
    %s215 = sphi 0, %s201
    %s219 = sphi 0, %s219
    %s221 = sphi 0, %s219
    %s222 = sphi 0, %s221
    %s236 = sphi 0, %s222
    %s240 = sphi 0, %s240
    %s242 = sphi 0, %s240
    %s243 = sphi 0, %s242
    %s257 = sphi 0, %s243
    %s263 = sphi 0, %s265
    %s266 = sphi 0, %s263
    %s267 = sphi 0, %s266
    %s283 = sphi 0, %s267
  $region4: #{trans_encoder_forward.5} parent=0 // loop_header_branch
    %20 = sbr.rel (%p18) target = $region8
  $region5: #{trans_encoder_forward.5} parent=0 // loop_body
    %s22 = ssub.s32 %s17, 1
    %s23 = ssub.s32 %s17, 2
    %s24 = sadd.s32 %s17, 1
    %s25 = ssub.s32 %s17, %s24
    %p26 = scmp.eq.s32.totalorder %s25, 0
    %s28 = sadd.s32 %s27, 1
    %s29 = scalar_select %p26, %s27, %s28
    %p32 = pneg %p26
    %p33 = scmp.eq.s32.totalorder %s17, 1
    %p34 = por %p32, %p33
    %p35 = scmp.ne.s32.totalorder %s27, %s30
    %p36 = scmp.eq.s32.totalorder %s17, 0
    %p37 = por %p35, %p36
    %p38 = scmp.ne.s32.totalorder %s27, %s30
    %p39 = scmp.eq.s32.totalorder %s22, 1
    %p40 = por %p38, %p39
    %p41 = scmp.ne.s32.totalorder %s30, %s31
    %p42 = scmp.eq.s32.totalorder %s22, 0
    %p43 = por %p41, %p42
    %p44 = scmp.ne.s32.totalorder %s30, %s31
    %p45 = scmp.eq.s32.totalorder %s23, 1
    %p46 = por %p44, %p45
    %p48 = scmp.ne.s32.totalorder %s31, %s47
    %p49 = scmp.eq.s32.totalorder %s23, 0
    %p50 = por %p48, %p49
    %s52 = sadd.s32 %s51, 1
    %p55 = scmp.eq.s32.totalorder %s17, 1
    %p56 = scmp.ne.s32.totalorder %s51, %s53
    %p57 = scmp.eq.s32.totalorder %s17, 0
    %p58 = por %p56, %p57
    %p59 = scmp.ne.s32.totalorder %s51, %s53
    %p60 = scmp.eq.s32.totalorder %s22, 1
    %p61 = por %p59, %p60
    %p62 = scmp.ne.s32.totalorder %s53, %s54
    %p63 = scmp.eq.s32.totalorder %s22, 0
    %p64 = por %p62, %p63
    %p65 = scmp.ne.s32.totalorder %s53, %s54
    %p66 = scmp.eq.s32.totalorder %s23, 1
    %p67 = por %p65, %p66
    %p69 = scmp.ne.s32.totalorder %s54, %s68
    %p70 = scmp.eq.s32.totalorder %s23, 0
    %p71 = por %p69, %p70
    %s73 = sadd.s32 %s72, 1
    %p76 = scmp.eq.s32.totalorder %s17, 1
    %p77 = scmp.ne.s32.totalorder %s72, %s74
    %p78 = scmp.eq.s32.totalorder %s17, 0
    %p79 = por %p77, %p78
    %p80 = scmp.ne.s32.totalorder %s72, %s74
    %p81 = scmp.eq.s32.totalorder %s22, 1
    %p82 = por %p80, %p81
    %p83 = scmp.ne.s32.totalorder %s74, %s75
    %p84 = scmp.eq.s32.totalorder %s22, 0
    %p85 = por %p83, %p84
    %p86 = scmp.ne.s32.totalorder %s74, %s75
    %p87 = scmp.eq.s32.totalorder %s23, 1
    %p88 = por %p86, %p87
    %p90 = scmp.ne.s32.totalorder %s75, %s89
    %p91 = scmp.eq.s32.totalorder %s23, 0
    %p92 = por %p90, %p91
    %s94 = sadd.s32 %s93, 1
    %p97 = scmp.eq.s32.totalorder %s17, 1
    %p98 = scmp.ne.s32.totalorder %s93, %s95
    %p99 = scmp.eq.s32.totalorder %s17, 0
    %p100 = por %p98, %p99
    %p101 = scmp.ne.s32.totalorder %s93, %s95
    %p102 = scmp.eq.s32.totalorder %s22, 1
    %p103 = por %p101, %p102
    %p104 = scmp.ne.s32.totalorder %s95, %s96
    %p105 = scmp.eq.s32.totalorder %s22, 0
    %p106 = por %p104, %p105
    %p107 = scmp.ne.s32.totalorder %s95, %s96
    %p108 = scmp.eq.s32.totalorder %s23, 1
    %p109 = por %p107, %p108
    %p111 = scmp.ne.s32.totalorder %s96, %s110
    %p112 = scmp.eq.s32.totalorder %s23, 0
    %p113 = por %p111, %p112
    %s115 = sadd.s32 %s114, 1
    %p118 = scmp.eq.s32.totalorder %s17, 1
    %p119 = scmp.ne.s32.totalorder %s114, %s116
    %p120 = scmp.eq.s32.totalorder %s17, 0
    %p121 = por %p119, %p120
    %p122 = scmp.ne.s32.totalorder %s114, %s116
    %p123 = scmp.eq.s32.totalorder %s22, 1
    %p124 = por %p122, %p123
    %p125 = scmp.ne.s32.totalorder %s116, %s117
    %p126 = scmp.eq.s32.totalorder %s22, 0
    %p127 = por %p125, %p126
    %p128 = scmp.ne.s32.totalorder %s116, %s117
    %p129 = scmp.eq.s32.totalorder %s23, 1
    %p130 = por %p128, %p129
    %p132 = scmp.ne.s32.totalorder %s117, %s131
    %p133 = scmp.eq.s32.totalorder %s23, 0
    %p134 = por %p132, %p133
    %s136 = sadd.s32 %s135, 1
    %p139 = scmp.eq.s32.totalorder %s17, 1
    %p140 = scmp.ne.s32.totalorder %s135, %s137
    %p141 = scmp.eq.s32.totalorder %s17, 0
    %p142 = por %p140, %p141
    %p143 = scmp.ne.s32.totalorder %s135, %s137
    %p144 = scmp.eq.s32.totalorder %s22, 1
    %p145 = por %p143, %p144
    %p146 = scmp.ne.s32.totalorder %s137, %s138
    %p147 = scmp.eq.s32.totalorder %s22, 0
    %p148 = por %p146, %p147
    %p149 = scmp.ne.s32.totalorder %s137, %s138
    %p150 = scmp.eq.s32.totalorder %s23, 1
    %p151 = por %p149, %p150
    %p153 = scmp.ne.s32.totalorder %s138, %s152
    %p154 = scmp.eq.s32.totalorder %s23, 0
    %p155 = por %p153, %p154
    %s157 = sadd.s32 %s156, 1
    %p160 = scmp.eq.s32.totalorder %s17, 1
    %p161 = scmp.ne.s32.totalorder %s156, %s158
    %p162 = scmp.eq.s32.totalorder %s17, 0
    %p163 = por %p161, %p162
    %p164 = scmp.ne.s32.totalorder %s156, %s158
    %p165 = scmp.eq.s32.totalorder %s22, 1
    %p166 = por %p164, %p165
    %p167 = scmp.ne.s32.totalorder %s158, %s159
    %p168 = scmp.eq.s32.totalorder %s22, 0
    %p169 = por %p167, %p168
    %p170 = scmp.ne.s32.totalorder %s158, %s159
    %p171 = scmp.eq.s32.totalorder %s23, 1
    %p172 = por %p170, %p171
    %p174 = scmp.ne.s32.totalorder %s159, %s173
    %p175 = scmp.eq.s32.totalorder %s23, 0
    %p176 = por %p174, %p175
    %s178 = sadd.s32 %s177, 1
    %p181 = scmp.eq.s32.totalorder %s17, 1
    %p182 = scmp.ne.s32.totalorder %s177, %s179
    %p183 = scmp.eq.s32.totalorder %s17, 0
    %p184 = por %p182, %p183
    %p185 = scmp.ne.s32.totalorder %s177, %s179
    %p186 = scmp.eq.s32.totalorder %s22, 1
    %p187 = por %p185, %p186
    %p188 = scmp.ne.s32.totalorder %s179, %s180
    %p189 = scmp.eq.s32.totalorder %s22, 0
    %p190 = por %p188, %p189
    %p191 = scmp.ne.s32.totalorder %s179, %s180
    %p192 = scmp.eq.s32.totalorder %s23, 1
    %p193 = por %p191, %p192
    %p195 = scmp.ne.s32.totalorder %s180, %s194
    %p196 = scmp.eq.s32.totalorder %s23, 0
    %p197 = por %p195, %p196
    %s199 = sadd.s32 %s198, 1
    %p202 = scmp.eq.s32.totalorder %s17, 1
    %p203 = scmp.ne.s32.totalorder %s198, %s200
    %p204 = scmp.eq.s32.totalorder %s17, 0
    %p205 = por %p203, %p204
    %p206 = scmp.ne.s32.totalorder %s198, %s200
    %p207 = scmp.eq.s32.totalorder %s22, 1
    %p208 = por %p206, %p207
    %p209 = scmp.ne.s32.totalorder %s200, %s201
    %p210 = scmp.eq.s32.totalorder %s22, 0
    %p211 = por %p209, %p210
    %p212 = scmp.ne.s32.totalorder %s200, %s201
    %p213 = scmp.eq.s32.totalorder %s23, 1
    %p214 = por %p212, %p213
    %p216 = scmp.ne.s32.totalorder %s201, %s215
    %p217 = scmp.eq.s32.totalorder %s23, 0
    %p218 = por %p216, %p217
    %s220 = sadd.s32 %s219, 1
    %p223 = scmp.eq.s32.totalorder %s17, 1
    %p224 = scmp.ne.s32.totalorder %s219, %s221
    %p225 = scmp.eq.s32.totalorder %s17, 0
    %p226 = por %p224, %p225
    %p227 = scmp.ne.s32.totalorder %s219, %s221
    %p228 = scmp.eq.s32.totalorder %s22, 1
    %p229 = por %p227, %p228
    %p230 = scmp.ne.s32.totalorder %s221, %s222
    %p231 = scmp.eq.s32.totalorder %s22, 0
    %p232 = por %p230, %p231
    %p233 = scmp.ne.s32.totalorder %s221, %s222
    %p234 = scmp.eq.s32.totalorder %s23, 1
    %p235 = por %p233, %p234
    %p237 = scmp.ne.s32.totalorder %s222, %s236
    %p238 = scmp.eq.s32.totalorder %s23, 0
    %p239 = por %p237, %p238
    %s241 = sadd.s32 %s240, 1
    %p244 = scmp.eq.s32.totalorder %s17, 1
    %p245 = scmp.ne.s32.totalorder %s240, %s242
    %p246 = scmp.eq.s32.totalorder %s17, 0
    %p247 = por %p245, %p246
    %p248 = scmp.ne.s32.totalorder %s240, %s242
    %p249 = scmp.eq.s32.totalorder %s22, 1
    %p250 = por %p248, %p249
    %p251 = scmp.ne.s32.totalorder %s242, %s243
    %p252 = scmp.eq.s32.totalorder %s22, 0
    %p253 = por %p251, %p252
    %p254 = scmp.ne.s32.totalorder %s242, %s243
    %p255 = scmp.eq.s32.totalorder %s23, 1
    %p256 = por %p254, %p255
    %p258 = scmp.ne.s32.totalorder %s243, %s257
    %p259 = scmp.eq.s32.totalorder %s23, 0
    %p260 = por %p258, %p259
    %s261 = ssub.s32 %s17, %s24
    %p262 = scmp.eq.s32.totalorder %s261, 0
    %s264 = sadd.s32 %s263, 1
    %s265 = scalar_select %p262, %s263, %s264
    %p268 = pneg %p262
    %p269 = scmp.eq.s32.totalorder %s17, 1
    %p270 = por %p268, %p269
    %p271 = scmp.ne.s32.totalorder %s263, %s266
    %p272 = scmp.eq.s32.totalorder %s17, 0
    %p273 = por %p271, %p272
    %p274 = scmp.ne.s32.totalorder %s263, %s266
    %p275 = scmp.eq.s32.totalorder %s22, 1
    %p276 = por %p274, %p275
    %p277 = scmp.ne.s32.totalorder %s266, %s267
    %p278 = scmp.eq.s32.totalorder %s22, 0
    %p279 = por %p277, %p278
    %p280 = scmp.ne.s32.totalorder %s266, %s267
    %p281 = scmp.eq.s32.totalorder %s23, 1
    %p282 = por %p280, %p281
    %p284 = scmp.ne.s32.totalorder %s267, %s283
    %p285 = scmp.eq.s32.totalorder %s23, 0
    %p286 = por %p284, %p285
    %p287 = scmp.le.s32.totalorder 1, %s17
    %p288 = scmp.lt.s32.totalorder %s17, 3
    %p289 = pnand %p287, %p288
    %p290 = pneg %p289
    // Predicated region
    $region9: #{trans_encoder_forward.5} parent=5 // pred_check
      _
    $region10: #{trans_encoder_forward.5} parent=5 // pred_check_branch
      %292 = sbr.rel (%p289) target = $region12
    $region11: #{trans_encoder_forward.5} parent=5 // pred_region
      %s293 = ssub.s32 %s17, 1
      // Predicated region
      $region13: #{trans_encoder_forward.5} parent=11 // pred_check
        %p294 = pneg %p64
      $region14: #{trans_encoder_forward.5} parent=11 // pred_check_branch
        %296 = sbr.rel (%p294) target = $region16
      $region15: #{trans_encoder_forward.5} parent=11 // pred_region
        _
      $region16: #{trans_encoder_forward.5} parent=11 // pred_fallthru
        _
      // Predicated region
      $region17: #{trans_encoder_forward.5} parent=11 // pred_check
        %p297 = pneg %p85
      $region18: #{trans_encoder_forward.5} parent=11 // pred_check_branch
        %299 = sbr.rel (%p297) target = $region20
      $region19: #{trans_encoder_forward.5} parent=11 // pred_region
        _
      $region20: #{trans_encoder_forward.5} parent=11 // pred_fallthru
        _
      // Predicated region
      $region21: #{trans_encoder_forward.5} parent=11 // pred_check
        %p300 = pneg %p106
      $region22: #{trans_encoder_forward.5} parent=11 // pred_check_branch
        %302 = sbr.rel (%p300) target = $region24
      $region23: #{trans_encoder_forward.5} parent=11 // pred_region
        _
      $region24: #{trans_encoder_forward.5} parent=11 // pred_fallthru
        _
      // Predicated region
      $region25: #{trans_encoder_forward.5} parent=11 // pred_check
        %p303 = pneg %p127
      $region26: #{trans_encoder_forward.5} parent=11 // pred_check_branch
        %305 = sbr.rel (%p303) target = $region28
      $region27: #{trans_encoder_forward.5} parent=11 // pred_region
        _
      $region28: #{trans_encoder_forward.5} parent=11 // pred_fallthru
        _
      // Predicated region
      $region29: #{trans_encoder_forward.5} parent=11 // pred_check
        %p306 = pneg %p148
      $region30: #{trans_encoder_forward.5} parent=11 // pred_check_branch
        %308 = sbr.rel (%p306) target = $region32
      $region31: #{trans_encoder_forward.5} parent=11 // pred_region
        _
      $region32: #{trans_encoder_forward.5} parent=11 // pred_fallthru
        _
      // Predicated region
      $region33: #{trans_encoder_forward.5} parent=11 // pred_check
        %p309 = pneg %p169
      $region34: #{trans_encoder_forward.5} parent=11 // pred_check_branch
        %311 = sbr.rel (%p309) target = $region36
      $region35: #{trans_encoder_forward.5} parent=11 // pred_region
        _
      $region36: #{trans_encoder_forward.5} parent=11 // pred_fallthru
        _
      // Predicated region
      $region37: #{trans_encoder_forward.5} parent=11 // pred_check
        %p312 = pneg %p190
      $region38: #{trans_encoder_forward.5} parent=11 // pred_check_branch
        %314 = sbr.rel (%p312) target = $region40
      $region39: #{trans_encoder_forward.5} parent=11 // pred_region
        _
      $region40: #{trans_encoder_forward.5} parent=11 // pred_fallthru
        _
      // Predicated region
      $region41: #{trans_encoder_forward.5} parent=11 // pred_check
        %p315 = pneg %p211
      $region42: #{trans_encoder_forward.5} parent=11 // pred_check_branch
        %317 = sbr.rel (%p315) target = $region44
      $region43: #{trans_encoder_forward.5} parent=11 // pred_region
        _
      $region44: #{trans_encoder_forward.5} parent=11 // pred_fallthru
        _
      // Predicated region
      $region45: #{trans_encoder_forward.5} parent=11 // pred_check
        %p318 = pneg %p232
      $region46: #{trans_encoder_forward.5} parent=11 // pred_check_branch
        %320 = sbr.rel (%p318) target = $region48
      $region47: #{trans_encoder_forward.5} parent=11 // pred_region
        _
      $region48: #{trans_encoder_forward.5} parent=11 // pred_fallthru
        _
      // Predicated region
      $region49: #{trans_encoder_forward.5} parent=11 // pred_check
        %p321 = pneg %p253
      $region50: #{trans_encoder_forward.5} parent=11 // pred_check_branch
        %323 = sbr.rel (%p321) target = $region52
      $region51: #{trans_encoder_forward.5} parent=11 // pred_region
        _
      $region52: #{trans_encoder_forward.5} parent=11 // pred_fallthru
        _
    $region12: #{trans_encoder_forward.5} parent=5 // pred_fallthru
      _
    %p324 = scmp.lt.s32.totalorder %s17, 2
    // Predicated region
    $region53: #{trans_encoder_forward.5} parent=5 // pred_check
      %p325 = pneg %p324
    $region54: #{trans_encoder_forward.5} parent=5 // pred_check_branch
      %327 = sbr.rel (%p325) target = $region56
    $region55: #{trans_encoder_forward.5} parent=5 // pred_region
      // Predicated region
      $region57: #{trans_encoder_forward.5} parent=55 // pred_check
        %p328 = pneg %p37
      $region58: #{trans_encoder_forward.5} parent=55 // pred_check_branch
        %330 = sbr.rel (%p328) target = $region60
      $region59: #{trans_encoder_forward.5} parent=55 // pred_region
        %p331 = scmp.lt.s32.totalorder %s17, 1
        %s332 = scalar_select %p331, %s17, 1
        %s333 = smul.addr %s332, 8
        %s334 = scalar_lea.vmem %s0, %s333
      $region60: #{trans_encoder_forward.5} parent=55 // pred_fallthru
        _
    $region56: #{trans_encoder_forward.5} parent=5 // pred_fallthru
      _
    %p335 = scmp.le.s32.totalorder 1, %s17
    %p336 = scmp.lt.s32.totalorder %s17, 3
    %p337 = pnand %p335, %p336
    %p338 = pneg %p337
    // Predicated region
    $region61: #{trans_encoder_forward.5} parent=5 // pred_check
      _
    $region62: #{trans_encoder_forward.5} parent=5 // pred_check_branch
      %340 = sbr.rel (%p337) target = $region64
    $region63: #{trans_encoder_forward.5} parent=5 // pred_region
      %s341 = ssub.s32 %s17, 1
      %p342 = scmp.lt.s32.totalorder %s22, 1
      %s343 = scalar_select %p342, %s22, 1
      %s344 = smul.addr %s343, 8
      %s345 = scalar_lea.vmem %s0, %s344
      %p346 = pneg %p43
      %p347 = pneg %p40
      %p348 = pneg %p64
      %p349 = pneg %p61
      %p350 = pneg %p85
      %p351 = pneg %p82
      %p352 = pneg %p106
      %p353 = pneg %p103
      %p354 = pneg %p127
      %p355 = pneg %p124
      %p356 = pneg %p148
      %p357 = pneg %p145
      %p358 = pneg %p169
      %p359 = pneg %p166
      %p360 = pneg %p190
      %p361 = pneg %p187
      %p362 = pneg %p211
      %p363 = pneg %p208
      %p364 = pneg %p232
      %p365 = pneg %p229
      %p366 = pneg %p253
      %p367 = pneg %p250
      %p368 = pneg %p279
      %p369 = pneg %p276
      %p370 = scmp.lt.s32.totalorder %s22, 1
      %s371 = scalar_select %p370, %s22, 1
      %s372 = smul.addr %s371, 8
      %s373 = scalar_lea.vmem %s11, %s372
      %p374 = scmp.lt.s32.totalorder %s22, 1
      %s375 = scalar_select %p374, %s22, 1
      %s376 = smul.addr %s375, 8
      %s377 = scalar_lea.vmem %s0, %s376
      %p378 = scmp.lt.s32.totalorder %s22, 1
      %s379 = scalar_select %p378, %s22, 1
      %s380 = smul.addr %s379, 8
      %s381 = scalar_lea.vmem %s11, %s380
      %v383 = vld [vmem:[%s377] sm:$0xff]
      %v384 = vpack.c.bf16 %v383, %v383
      %v385 = vld [vmem:[%s1] sm:$0xf]
      %v386 = vld [vmem:[%s1 + $0x4] sm:$0xf]
      %v387 = vld [vmem:[%s1 + $0x8] sm:$0xf]
      %v388 = vld [vmem:[%s1 + $0xc] sm:$0xf]
      %v389 = vld [vmem:[%s2] sm:$0x1]
      %v391 = vperm.slane %v389, 0
      %v397 = vunpack.c.l.b16 %v385
      %v398 = vunpack.c.l.b16 %v386
      %v399 = vunpack.c.l.b16 %v387
      %v400 = vunpack.c.l.b16 %v388
      %v401 = vpack.c.b16 %v398, %v397
      %v402 = vpack.c.b16 %v400, %v399
      %vm405 = vcmask 261120
      %v407 = vsel %vm405, %v384, 0
      %409 = vmatpush.bf16.msra.mxu0 0
      %410 = vmatpush.bf16.msra.mxu0 0
      %411 = vmatpush.bf16.msra.mxu0 0
      %412 = vmatpush.bf16.msra.mxu0 0
      %413 = vmatpush.bf16.msra.mxu0 0
      %414 = vmatpush.bf16.msra.mxu0 0
      %415 = vmatpush.bf16.msra.mxu0 %v402
      %416 = vmatpush.bf16.msra.mxu0 %v401
      %417 = vmatmul.bf16.gmra.mxu0 %v407
      %v418 = vpop.f32.mrf.mxu0
      %v419 = vadd.f32 %v391, %v418
      %v420 = vpop.f32.mrf.mxu0
      %421 = vdwg.mxu0
      %v422 = vmul.f32 %v419, 0.35355338
      %v423 = vld [vmem:[%s3] sm:$0xf]
      %v424 = vld [vmem:[%s3 + $0x4] sm:$0xf]
      %v425 = vld [vmem:[%s3 + $0x8] sm:$0xf]
      %v426 = vld [vmem:[%s3 + $0xc] sm:$0xf]
      %v427 = vld [vmem:[%s4] sm:$0x1]
      %v429 = vperm.slane %v427, 0
      %v431 = vadd.f32 %v429, 0.0
      %v432 = vpack.c.bf16 %v422, %v422
      %v433 = vpack.c.bf16 %v419, %v419
      %435 = vrot.lane.b32.xlu0 %v433, 96
      %v436 = vpop.permute.xlu0 %435
      %vm437 = vcmask 64512
      %v439 = vsel %vm437, %v432, 0
      %v442 = vsel %vm437, %v436, 0
      %444 = vmatpush.bf16.xpose.msra.mxu0 0
      %445 = vmatpush.bf16.xpose.msra.mxu0 0
      %446 = vmatpush.bf16.xpose.msra.mxu0 0
      %447 = vmatpush.bf16.xpose.msra.mxu0 0
      %448 = vmatpush.bf16.xpose.msra.mxu0 0
      %449 = vmatpush.bf16.xpose.msra.mxu0 0
      %450 = vmatpush.bf16.xpose.msra.mxu0 0
      %451 = vmatpush.bf16.xpose.msra.mxu0 %v442
      %452 = vmatmul.bf16.gmra.mxu0 %v439
      %v453 = vpop.f32.mrf.mxu0
      %v454 = vadd.f32 0.0, %v453
      %v455 = vpop.f32.mrf.mxu0
      %456 = vdwg.mxu0
      %v457 = vsel %vm437, %v454, -inf
      %458 = vmax.xlane.f32.xlu0 %v457
      %v459 = vpop.xlane.xlu0 %458
      %v460 = vsub.f32 %v454, %v459
      %v461 = vmul.f32 %v460, 1.442695
      %v462 = vpow.pop %v461
      %v463 = vsel %vm437, %v462, 0.0
      %464 = vadd.xlane.f32.xlu0 %v463
      %v465 = vpop.xlane.xlu0 %464
      %v466 = vrcp.pop %v465
      %v467 = vmul.f32 %v462, %v466
      %v468 = vpack.c.bf16 %v467, %v467
      %469 = vrot.lane.b32.xlu0 %v433, 64
      %v470 = vpop.permute.xlu0 %469
      %v472 = vsel %vm437, %v468, 0
      %vm474 = vcmask 1043456
      %v476 = vsel %vm474, %v470, 0
      %478 = vmatpush.bf16.msra.mxu0 0
      %479 = vmatpush.bf16.msra.mxu0 0
      %480 = vmatpush.bf16.msra.mxu0 0
      %481 = vmatpush.bf16.msra.mxu0 0
      %482 = vmatpush.bf16.msra.mxu0 0
      %483 = vmatpush.bf16.msra.mxu0 0
      %484 = vmatpush.bf16.msra.mxu0 0
      %485 = vmatpush.bf16.msra.mxu0 %v476
      %486 = vmatmul.bf16.gmra.mxu0 %v472
      %v487 = vpop.f32.mrf.mxu0
      %v488 = vadd.f32 0.0, %v487
      %v489 = vpop.f32.mrf.mxu0
      %490 = vdwg.mxu0
      %v491 = vpack.c.bf16 %v488, %v488
      %v493 = vsel %vm437, %v491, 0
      %v496 = vsel %vm474, %v423, 0
      %498 = vmatpush.bf16.msra.mxu0 0
      %499 = vmatpush.bf16.msra.mxu0 0
      %500 = vmatpush.bf16.msra.mxu0 0
      %501 = vmatpush.bf16.msra.mxu0 0
      %502 = vmatpush.bf16.msra.mxu0 0
      %503 = vmatpush.bf16.msra.mxu0 0
      %504 = vmatpush.bf16.msra.mxu0 0
      %505 = vmatpush.bf16.msra.mxu0 %v496
      %506 = vmatmul.bf16.gmra.mxu0 %v493
      %v507 = vpop.f32.mrf.mxu0
      %v508 = vadd.f32 0.0, %v507
      %v509 = vpop.f32.mrf.mxu0
      %510 = vdwg.mxu0
      %v511 = vadd.f32 %v431, %v508
      %513 = vrot.lane.b32.xlu0 %v432, 120
      %v514 = vpop.permute.xlu0 %513
      %515 = vrot.lane.b32.xlu0 %v433, 88
      %v516 = vpop.permute.xlu0 %515
      %v518 = vsel %vm437, %v514, 0
      %v521 = vsel %vm437, %v516, 0
      %523 = vmatpush.bf16.xpose.msra.mxu0 0
      %524 = vmatpush.bf16.xpose.msra.mxu0 0
      %525 = vmatpush.bf16.xpose.msra.mxu0 0
      %526 = vmatpush.bf16.xpose.msra.mxu0 0
      %527 = vmatpush.bf16.xpose.msra.mxu0 0
      %528 = vmatpush.bf16.xpose.msra.mxu0 0
      %529 = vmatpush.bf16.xpose.msra.mxu0 0
      %530 = vmatpush.bf16.xpose.msra.mxu0 %v521
      %531 = vmatmul.bf16.gmra.mxu0 %v518
      %v532 = vpop.f32.mrf.mxu0
      %v533 = vadd.f32 0.0, %v532
      %v534 = vpop.f32.mrf.mxu0
      %535 = vdwg.mxu0
      %v536 = vsel %vm437, %v533, -inf
      %537 = vmax.xlane.f32.xlu0 %v536
      %v538 = vpop.xlane.xlu0 %537
      %v539 = vsub.f32 %v533, %v538
      %v540 = vmul.f32 %v539, 1.442695
      %v541 = vpow.pop %v540
      %v542 = vsel %vm437, %v541, 0.0
      %543 = vadd.xlane.f32.xlu0 %v542
      %v544 = vpop.xlane.xlu0 %543
      %v545 = vrcp.pop %v544
      %v546 = vmul.f32 %v541, %v545
      %v547 = vpack.c.bf16 %v546, %v546
      %548 = vrot.lane.b32.xlu0 %v433, 56
      %v549 = vpop.permute.xlu0 %548
      %v551 = vsel %vm437, %v547, 0
      %v554 = vsel %vm474, %v549, 0
      %556 = vmatpush.bf16.msra.mxu0 0
      %557 = vmatpush.bf16.msra.mxu0 0
      %558 = vmatpush.bf16.msra.mxu0 0
      %559 = vmatpush.bf16.msra.mxu0 0
      %560 = vmatpush.bf16.msra.mxu0 0
      %561 = vmatpush.bf16.msra.mxu0 0
      %562 = vmatpush.bf16.msra.mxu0 0
      %563 = vmatpush.bf16.msra.mxu0 %v554
      %564 = vmatmul.bf16.gmra.mxu0 %v551
      %v565 = vpop.f32.mrf.mxu0
      %v566 = vadd.f32 0.0, %v565
      %v567 = vpop.f32.mrf.mxu0
      %568 = vdwg.mxu0
      %v569 = vpack.c.bf16 %v566, %v566
      %v571 = vsel %vm437, %v569, 0
      %v574 = vsel %vm474, %v424, 0
      %576 = vmatpush.bf16.msra.mxu0 0
      %577 = vmatpush.bf16.msra.mxu0 0
      %578 = vmatpush.bf16.msra.mxu0 0
      %579 = vmatpush.bf16.msra.mxu0 0
      %580 = vmatpush.bf16.msra.mxu0 0
      %581 = vmatpush.bf16.msra.mxu0 0
      %582 = vmatpush.bf16.msra.mxu0 0
      %583 = vmatpush.bf16.msra.mxu0 %v574
      %584 = vmatmul.bf16.gmra.mxu0 %v571
      %v585 = vpop.f32.mrf.mxu0
      %v586 = vadd.f32 0.0, %v585
      %v587 = vpop.f32.mrf.mxu0
      %588 = vdwg.mxu0
      %v589 = vadd.f32 %v511, %v586
      %590 = vrot.lane.b32.xlu0 %v432, 112
      %v591 = vpop.permute.xlu0 %590
      %592 = vrot.lane.b32.xlu0 %v433, 80
      %v593 = vpop.permute.xlu0 %592
      %v595 = vsel %vm437, %v591, 0
      %v598 = vsel %vm437, %v593, 0
      %600 = vmatpush.bf16.xpose.msra.mxu0 0
      %601 = vmatpush.bf16.xpose.msra.mxu0 0
      %602 = vmatpush.bf16.xpose.msra.mxu0 0
      %603 = vmatpush.bf16.xpose.msra.mxu0 0
      %604 = vmatpush.bf16.xpose.msra.mxu0 0
      %605 = vmatpush.bf16.xpose.msra.mxu0 0
      %606 = vmatpush.bf16.xpose.msra.mxu0 0
      %607 = vmatpush.bf16.xpose.msra.mxu0 %v598
      %608 = vmatmul.bf16.gmra.mxu0 %v595
      %v609 = vpop.f32.mrf.mxu0
      %v610 = vadd.f32 0.0, %v609
      %v611 = vpop.f32.mrf.mxu0
      %612 = vdwg.mxu0
      %v613 = vsel %vm437, %v610, -inf
      %614 = vmax.xlane.f32.xlu0 %v613
      %v615 = vpop.xlane.xlu0 %614
      %v616 = vsub.f32 %v610, %v615
      %v617 = vmul.f32 %v616, 1.442695
      %v618 = vpow.pop %v617
      %v619 = vsel %vm437, %v618, 0.0
      %620 = vadd.xlane.f32.xlu0 %v619
      %v621 = vpop.xlane.xlu0 %620
      %v622 = vrcp.pop %v621
      %v623 = vmul.f32 %v618, %v622
      %v624 = vpack.c.bf16 %v623, %v623
      %625 = vrot.lane.b32.xlu0 %v433, 48
      %v626 = vpop.permute.xlu0 %625
      %v628 = vsel %vm437, %v624, 0
      %v631 = vsel %vm474, %v626, 0
      %633 = vmatpush.bf16.msra.mxu0 0
      %634 = vmatpush.bf16.msra.mxu0 0
      %635 = vmatpush.bf16.msra.mxu0 0
      %636 = vmatpush.bf16.msra.mxu0 0
      %637 = vmatpush.bf16.msra.mxu0 0
      %638 = vmatpush.bf16.msra.mxu0 0
      %639 = vmatpush.bf16.msra.mxu0 0
      %640 = vmatpush.bf16.msra.mxu0 %v631
      %641 = vmatmul.bf16.gmra.mxu0 %v628
      %v642 = vpop.f32.mrf.mxu0
      %v643 = vadd.f32 0.0, %v642
      %v644 = vpop.f32.mrf.mxu0
      %645 = vdwg.mxu0
      %v646 = vpack.c.bf16 %v643, %v643
      %v648 = vsel %vm437, %v646, 0
      %v651 = vsel %vm474, %v425, 0
      %653 = vmatpush.bf16.msra.mxu0 0
      %654 = vmatpush.bf16.msra.mxu0 0
      %655 = vmatpush.bf16.msra.mxu0 0
      %656 = vmatpush.bf16.msra.mxu0 0
      %657 = vmatpush.bf16.msra.mxu0 0
      %658 = vmatpush.bf16.msra.mxu0 0
      %659 = vmatpush.bf16.msra.mxu0 0
      %660 = vmatpush.bf16.msra.mxu0 %v651
      %661 = vmatmul.bf16.gmra.mxu0 %v648
      %v662 = vpop.f32.mrf.mxu0
      %v663 = vadd.f32 0.0, %v662
      %v664 = vpop.f32.mrf.mxu0
      %665 = vdwg.mxu0
      %v666 = vadd.f32 %v589, %v663
      %667 = vrot.lane.b32.xlu0 %v432, 104
      %v668 = vpop.permute.xlu0 %667
      %669 = vrot.lane.b32.xlu0 %v433, 72
      %v670 = vpop.permute.xlu0 %669
      %v672 = vsel %vm437, %v668, 0
      %v675 = vsel %vm437, %v670, 0
      %677 = vmatpush.bf16.xpose.msra.mxu0 0
      %678 = vmatpush.bf16.xpose.msra.mxu0 0
      %679 = vmatpush.bf16.xpose.msra.mxu0 0
      %680 = vmatpush.bf16.xpose.msra.mxu0 0
      %681 = vmatpush.bf16.xpose.msra.mxu0 0
      %682 = vmatpush.bf16.xpose.msra.mxu0 0
      %683 = vmatpush.bf16.xpose.msra.mxu0 0
      %684 = vmatpush.bf16.xpose.msra.mxu0 %v675
      %685 = vmatmul.bf16.gmra.mxu0 %v672
      %v686 = vpop.f32.mrf.mxu0
      %v687 = vadd.f32 0.0, %v686
      %v688 = vpop.f32.mrf.mxu0
      %689 = vdwg.mxu0
      %v690 = vsel %vm437, %v687, -inf
      %691 = vmax.xlane.f32.xlu0 %v690
      %v692 = vpop.xlane.xlu0 %691
      %v693 = vsub.f32 %v687, %v692
      %v694 = vmul.f32 %v693, 1.442695
      %v695 = vpow.pop %v694
      %v696 = vsel %vm437, %v695, 0.0
      %697 = vadd.xlane.f32.xlu0 %v696
      %v698 = vpop.xlane.xlu0 %697
      %v699 = vrcp.pop %v698
      %v700 = vmul.f32 %v695, %v699
      %v701 = vpack.c.bf16 %v700, %v700
      %702 = vrot.lane.b32.xlu0 %v433, 40
      %v703 = vpop.permute.xlu0 %702
      %v705 = vsel %vm437, %v701, 0
      %v708 = vsel %vm474, %v703, 0
      %710 = vmatpush.bf16.msra.mxu0 0
      %711 = vmatpush.bf16.msra.mxu0 0
      %712 = vmatpush.bf16.msra.mxu0 0
      %713 = vmatpush.bf16.msra.mxu0 0
      %714 = vmatpush.bf16.msra.mxu0 0
      %715 = vmatpush.bf16.msra.mxu0 0
      %716 = vmatpush.bf16.msra.mxu0 0
      %717 = vmatpush.bf16.msra.mxu0 %v708
      %718 = vmatmul.bf16.gmra.mxu0 %v705
      %v719 = vpop.f32.mrf.mxu0
      %v720 = vadd.f32 0.0, %v719
      %v721 = vpop.f32.mrf.mxu0
      %722 = vdwg.mxu0
      %v723 = vpack.c.bf16 %v720, %v720
      %v725 = vsel %vm437, %v723, 0
      %v728 = vsel %vm474, %v426, 0
      %730 = vmatpush.bf16.msra.mxu0 0
      %731 = vmatpush.bf16.msra.mxu0 0
      %732 = vmatpush.bf16.msra.mxu0 0
      %733 = vmatpush.bf16.msra.mxu0 0
      %734 = vmatpush.bf16.msra.mxu0 0
      %735 = vmatpush.bf16.msra.mxu0 0
      %736 = vmatpush.bf16.msra.mxu0 0
      %737 = vmatpush.bf16.msra.mxu0 %v728
      %738 = vmatmul.bf16.gmra.mxu0 %v725
      %v739 = vpop.f32.mrf.mxu0
      %v740 = vadd.f32 0.0, %v739
      %v741 = vpop.f32.mrf.mxu0
      %742 = vdwg.mxu0
      %v743 = vadd.f32 %v666, %v740
      %v744 = vld [vmem:[%s9] sm:$0x1]
      %v745 = vld [vmem:[%s10] sm:$0x1]
      %v746 = vadd.f32 %v383, %v743
      %v747 = vsel %vm405, %v746, 0.0
      %748 = vadd.xlane.f32.xlu0 %v747
      %v749 = vpop.xlane.xlu0 %748
      %v750 = vrcp.pop 32.0
      %v751 = vmul.f32 32.0, %v750
      %v752 = vsub.f32 1.0, %v751
      %v753 = vmul.f32 %v750, %v752
      %v754 = vadd.f32 %v750, %v753
      %vm755 = vweird.f32 %v750
      %v756 = vsel %vm755, %v750, %v754
      %v757 = vmul.f32 %v749, %v756
      %v758 = vsub.f32 %v746, %v757
      %v759 = vmul.f32 %v758, %v758
      %v760 = vsel %vm405, %v759, 0.0
      %761 = vadd.xlane.f32.xlu0 %v760
      %v762 = vpop.xlane.xlu0 %761
      %v763 = vmul.f32 %v762, %v756
      %v764 = vadd.f32 %v763, 1e-05
      %v765 = vrsqrt.pop %v764
      %v766 = vmul.f32 %v765, %v764
      %v767 = vmul.f32 %v766, %v765
      %v768 = vmul.f32 0.5, %v767
      %v769 = vsub.f32 1.5, %v768
      %v770 = vmul.f32 %v765, %v769
      %vm771 = vweird.f32 %v764
      %vm772 = vweird.f32 %v765
      %vm773 = vmor %vm771, %vm772
      %v774 = vsel %vm773, %v765, %v770
      %v775 = vmul.f32 %v758, %v774
      %v777 = vperm.slane %v744, 0
      %v779 = vmul.f32 %v775, %v777
      %v781 = vperm.slane %v745, 0
      %v783 = vadd.f32 %v779, %v781
      %v784 = vpack.c.bf16 %v783, %v783
      %v785 = vld [vmem:[%s5] sm:$0xf]
      %v786 = vld [vmem:[%s5 + $0x4] sm:$0xf]
      %v787 = vld [vmem:[%s5 + $0x8] sm:$0xf]
      %v788 = vld [vmem:[%s5 + $0xc] sm:$0xf]
      %v789 = vld [vmem:[%s6] sm:$0x1]
      %v791 = vperm.slane %v789, 0
      %v797 = vunpack.c.l.b16 %v785
      %v798 = vunpack.c.l.b16 %v786
      %v799 = vunpack.c.l.b16 %v787
      %v800 = vunpack.c.l.b16 %v788
      %v801 = vpack.c.b16 %v798, %v797
      %v802 = vpack.c.b16 %v800, %v799
      %v806 = vsel %vm405, %v784, 0
      %808 = vmatpush.bf16.msra.mxu0 0
      %809 = vmatpush.bf16.msra.mxu0 0
      %810 = vmatpush.bf16.msra.mxu0 0
      %811 = vmatpush.bf16.msra.mxu0 0
      %812 = vmatpush.bf16.msra.mxu0 0
      %813 = vmatpush.bf16.msra.mxu0 0
      %814 = vmatpush.bf16.msra.mxu0 %v802
      %815 = vmatpush.bf16.msra.mxu0 %v801
      %816 = vmatmul.bf16.gmra.mxu0 %v806
      %v817 = vpop.f32.mrf.mxu0
      %v818 = vadd.f32 %v791, %v817
      %v819 = vpop.f32.mrf.mxu0
      %820 = vdwg.mxu0
      %v821 = vmax.f32 %v818, 0.0
      %v822 = vpack.c.bf16 %v821, %v821
      %v823 = vld [vmem:[%s7] sm:$0xf]
      %v824 = vld [vmem:[%s7 + $0x4] sm:$0xf]
      %v825 = vld [vmem:[%s7 + $0x8] sm:$0xf]
      %v826 = vld [vmem:[%s7 + $0xc] sm:$0xf]
      %v827 = vld [vmem:[%s7 + $0x10] sm:$0xf]
      %v828 = vld [vmem:[%s7 + $0x14] sm:$0xf]
      %v829 = vld [vmem:[%s7 + $0x18] sm:$0xf]
      %v830 = vld [vmem:[%s7 + $0x1c] sm:$0xf]
      %v831 = vld [vmem:[%s8] sm:$0x1]
      %v833 = vperm.slane %v831, 0
      %v843 = vunpack.c.l.b16 %v823
      %v844 = vunpack.c.l.b16 %v824
      %v845 = vunpack.c.l.b16 %v825
      %v846 = vunpack.c.l.b16 %v826
      %v847 = vunpack.c.l.b16 %v827
      %v848 = vunpack.c.l.b16 %v828
      %v849 = vunpack.c.l.b16 %v829
      %v850 = vunpack.c.l.b16 %v830
      %v851 = vpack.c.b16 %v844, %v843
      %v852 = vpack.c.b16 %v846, %v845
      %v853 = vpack.c.b16 %v848, %v847
      %v854 = vpack.c.b16 %v850, %v849
      %vm859 = vcmask 523264
      %v861 = vsel %vm859, %v822, 0
      %863 = vmatpush.bf16.msra.mxu0 0
      %864 = vmatpush.bf16.msra.mxu0 0
      %865 = vmatpush.bf16.msra.mxu0 0
      %866 = vmatpush.bf16.msra.mxu0 0
      %867 = vmatpush.bf16.msra.mxu0 %v854
      %868 = vmatpush.bf16.msra.mxu0 %v853
      %869 = vmatpush.bf16.msra.mxu0 %v852
      %870 = vmatpush.bf16.msra.mxu0 %v851
      %871 = vmatmul.bf16.gmra.mxu0 %v861
      %v872 = vpop.f32.mrf.mxu0
      %v873 = vadd.f32 %v833, %v872
      %v874 = vpop.f32.mrf.mxu0
      %875 = vdwg.mxu0
      %v876 = vadd.f32 %v783, %v873
      %v877 = vsel %vm405, %v876, 0.0
      %878 = vadd.xlane.f32.xlu0 %v877
      %v879 = vpop.xlane.xlu0 %878
      %v880 = vmul.f32 %v879, %v756
      %v881 = vsub.f32 %v876, %v880
      %v882 = vmul.f32 %v881, %v881
      %v883 = vsel %vm405, %v882, 0.0
      %884 = vadd.xlane.f32.xlu0 %v883
      %v885 = vpop.xlane.xlu0 %884
      %v886 = vmul.f32 %v885, %v756
      %v887 = vadd.f32 %v886, 1e-05
      %v888 = vrsqrt.pop %v887
      %v889 = vmul.f32 %v888, %v887
      %v890 = vmul.f32 %v889, %v888
      %v891 = vmul.f32 0.5, %v890
      %v892 = vsub.f32 1.5, %v891
      %v893 = vmul.f32 %v888, %v892
      %vm894 = vweird.f32 %v887
      %vm895 = vweird.f32 %v888
      %vm896 = vmor %vm894, %vm895
      %v897 = vsel %vm896, %v888, %v893
      %v898 = vmul.f32 %v881, %v897
      %v899 = vmul.f32 %v898, %v777
      %v900 = vadd.f32 %v899, %v781
      %901 = vst.msk [vmem:[%s381] sm:$0xff] %vm405, %v900
      %p902 = scmp.lt.s32.totalorder %s22, 1
      %s903 = scalar_select %p902, %s22, 1
      %s904 = smul.addr %s903, 8
      %s905 = scalar_lea.vmem %s11, %s904
      // Predicated region
      $region65: #{trans_encoder_forward.5} parent=63 // pred_check
        %p906 = pneg %p276
      $region66: #{trans_encoder_forward.5} parent=63 // pred_check_branch
        %908 = sbr.rel (%p906) target = $region68
      $region67: #{trans_encoder_forward.5} parent=63 // pred_region
        _
      $region68: #{trans_encoder_forward.5} parent=63 // pred_fallthru
        _
    $region64: #{trans_encoder_forward.5} parent=5 // pred_fallthru
      _
    %p909 = scmp.le.s32.totalorder 2, %s17
    // Predicated region
    $region69: #{trans_encoder_forward.5} parent=5 // pred_check
      %p910 = pneg %p909
    $region70: #{trans_encoder_forward.5} parent=5 // pred_check_branch
      %912 = sbr.rel (%p910) target = $region72
    $region71: #{trans_encoder_forward.5} parent=5 // pred_region
      %s913 = ssub.s32 %s17, 2
      // Predicated region
      $region73: #{trans_encoder_forward.5} parent=71 // pred_check
        %p914 = pneg %p282
      $region74: #{trans_encoder_forward.5} parent=71 // pred_check_branch
        %916 = sbr.rel (%p914) target = $region76
      $region75: #{trans_encoder_forward.5} parent=71 // pred_region
        %p917 = scmp.lt.s32.totalorder %s23, 1
        %s918 = scalar_select %p917, %s23, 1
        %s919 = smul.addr %s918, 8
        %s920 = scalar_lea.vmem %s11, %s919
      $region76: #{trans_encoder_forward.5} parent=71 // pred_fallthru
        _
    $region72: #{trans_encoder_forward.5} parent=5 // pred_fallthru
      _
  $region6: #{trans_encoder_forward.5} parent=0 // loop_footer
    %s21 = sadd.s32 1, %s17
  $region7: #{trans_encoder_forward.5} parent=0 // loop_footer_branch
    %16 = sbr.rel target = $region3
  $region8: #{trans_encoder_forward.5} parent=0 // loop_exit
    _

</llo_original>
